<compile_context>
chip_gen: v6e
topology: v6e:2x2x1
jax: 0.10.0
libtpu: 0.0.40
codegen_flags: <defaults>
</compile_context>

<pallas_src>
import jax
import jax.numpy as jnp
from jax.experimental import pallas as pl
from jax.experimental.pallas import tpu as pltpu

ALPHA = 0.1           # CELU alpha used by ANI
INV_ALPHA = 10.0      # pre-folded 1/alpha (constant multiply instead of divide)

# ModuleList order in the PyTorch code: [H, C, O, N, S, F, Cl]
HIDDEN_SIZES = [
    (256, 192, 160),  # H
    (224, 192, 160),  # C
    (192, 160, 128),  # O
    (192, 160, 128),  # N
    (160, 128, 96),   # S
    (160, 128, 96),   # F
    (160, 128, 96),   # Cl
]
NUM_SPECIES = len(HIDDEN_SIZES)
H1, H2, H3 = 256, 192, 160  # padded (max) hidden widths


def celu(x):
    # torch.nn.CELU(0.1): max(0,x) + min(0, a*(exp(x/a)-1)).
    # where + exp form is one VALU op cheaper; inf from the positive-branch exp is
    # discarded by the select (no NaN).
    return jnp.where(x > 0, x, ALPHA * (jnp.exp(x * INV_ALPHA) - 1.0))


def _make_ani_kernel(celu_dtype):
    def kernel(gid_ref,                              # SMEM prefetch: (n_tiles_max,) int32
               aev_ref,                              # (T, aev_dim_p) compute dtype
               w1_ref, b1_ref, w2_ref, b2_ref,
               w3_ref, b3_ref, w4_ref, b4_ref,       # per-species blocks (leading dim 1)
               out_ref):                             # (T, 1) out dtype
        gid = gid_ref[pl.program_id(0)]

        @pl.when(gid < NUM_SPECIES)
        def _():
            x = aev_ref[...]
            z = jnp.dot(x, w1_ref[0], preferred_element_type=jnp.float32) + b1_ref[0]
            h = celu(z.astype(celu_dtype))
            z = jnp.dot(h.astype(w2_ref.dtype), w2_ref[0],
                        preferred_element_type=jnp.float32) + b2_ref[0]
            h = celu(z.astype(celu_dtype))
            z = jnp.dot(h.astype(w3_ref.dtype), w3_ref[0],
                        preferred_element_type=jnp.float32) + b3_ref[0]
            h = celu(z.astype(celu_dtype))
            # final Linear(h3 -> 1) as elementwise mul + lane reduction (no width-1 matmul)
            e = jnp.sum(h * w4_ref[0], axis=-1, keepdims=True) + b4_ref[0]     # (T, 1) f32
            out_ref[...] = e.astype(out_ref.dtype)

        @pl.when(gid >= NUM_SPECIES)
        def _():
            # sentinel tail tiles (static upper bound on the schedule): write zeros
            out_ref[...] = jnp.zeros_like(out_ref)

    return kernel


def ani_interaction_forward(species, aev, params, *, tile_atoms=256,
                            compute_dtype=jnp.bfloat16, celu_dtype=jnp.float32):
    """species: (N,) int; aev: (N, aev_dim) float -> (N,) with dtype == aev.dtype."""
    out_dtype = aev.dtype
    sp_shape = species.shape
    species = species.reshape(-1).astype(jnp.int32)
    n = species.shape[0]
    aev_dim = aev.shape[-1]
    aev = aev.reshape(n, aev_dim)
    T = tile_atoms

    aev_dim_p = ((aev_dim + 127) // 128) * 128   # lane-aligned feature dim

    # ---------- grouped-matmul schedule: species-sorted, per-species tile alignment ----
    sp_range = jnp.arange(NUM_SPECIES, dtype=jnp.int32)
    counts = jnp.sum(species[:, None] == sp_range[None, :], axis=0, dtype=jnp.int32)
    starts = jnp.concatenate([jnp.zeros((1,), jnp.int32),
                              jnp.cumsum(counts)[:-1].astype(jnp.int32)])
    tiles_per = (counts + T - 1) // T
    tile_starts = jnp.concatenate([jnp.zeros((1,), jnp.int32),
                                   jnp.cumsum(tiles_per)[:-1].astype(jnp.int32)])

    n_tiles_max = (n + T - 1) // T + NUM_SPECIES   # static upper bound on scheduled tiles
    n_rows = n_tiles_max * T

    order = jnp.argsort(species)                       # sorted position -> original index
    sp_sorted = species[order]
    rank = jnp.arange(n, dtype=jnp.int32) - starts[sp_sorted]
    sched_rows = tile_starts[sp_sorted] * T + rank     # scheduled row of sorted atom j
    dest_rows = jnp.zeros((n,), jnp.int32).at[order].set(sched_rows)   # per ORIGINAL atom

    # per-tile species id; sentinel NUM_SPECIES for unused tail tiles
    tile_idx = jnp.arange(n_tiles_max, dtype=jnp.int32)
    gid = jnp.full((n_tiles_max,), NUM_SPECIES, dtype=jnp.int32)
    for s in range(NUM_SPECIES):
        in_s = (tile_idx >= tile_starts[s]) & (tile_idx < tile_starts[s] + tiles_per[s])
        gid = jnp.where(in_s, jnp.int32(s), gid)

    # one light pre-pass over aev: cast to compute dtype, pad features, single row scatter
    aev_cd = jnp.pad(aev.astype(compute_dtype), ((0, 0), (0, aev_dim_p - aev_dim)))
    aev_sched = jnp.zeros((n_rows, aev_dim_p), compute_dtype).at[dest_rows].set(aev_cd)
    # TODO(synk): for very large N, fuse this row scatter into the kernel via a
    # scalar-prefetched row-index table + pl.Element row-gather BlockSpec.

    # weights: matmul operands in compute_dtype; biases / w4 / accumulation stay f32
    w1 = jnp.pad(params["w1"],
                 ((0, 0), (0, aev_dim_p - aev_dim), (0, 0))).astype(compute_dtype)
    w2 = params["w2"].astype(compute_dtype)
    w3 = params["w3"].astype(compute_dtype)
    b1, b2, b3 = params["b1"], params["b2"], params["b3"]
    w4, b4 = params["w4"], params["b4"]

    def g(t, gid_ref):
        # clamp sentinel gid so skipped tail steps never index the weight stack OOB
        return jnp.minimum(gid_ref[t], NUM_SPECIES - 1)

    out_sched = pl.pallas_call(
        _make_ani_kernel(celu_dtype),
        out_shape=jax.ShapeDtypeStruct((n_rows, 1), out_dtype),
        grid_spec=pltpu.PrefetchScalarGridSpec(
            num_scalar_prefetch=1,
            grid=(n_tiles_max,),
            in_specs=[
                # one atom tile per grid step (each tile holds a single species)
                pl.BlockSpec((T, aev_dim_p), lambda t, gid_ref: (t, 0)),
                # per-species weight blocks selected by the prefetched group-id table;
                # consecutive tiles of the same species reuse the resident block (no re-DMA)
                pl.BlockSpec((1, aev_dim_p, H1), lambda t, gid_ref: (g(t, gid_ref), 0, 0)),
                pl.BlockSpec((1, 1, H1),         lambda t, gid_ref: (g(t, gid_ref), 0, 0)),
                pl.BlockSpec((1, H1, H2),        lambda t, gid_ref: (g(t, gid_ref), 0, 0)),
                pl.BlockSpec((1, 1, H2),         lambda t, gid_ref: (g(t, gid_ref), 0, 0)),
                pl.BlockSpec((1, H2, H3),        lambda t, gid_ref: (g(t, gid_ref), 0, 0)),
                pl.BlockSpec((1, 1, H3),         lambda t, gid_ref: (g(t, gid_ref), 0, 0)),
                pl.BlockSpec((1, 1, H3),         lambda t, gid_ref: (g(t, gid_ref), 0, 0)),  # w4
                pl.BlockSpec((1, 1, 1),          lambda t, gid_ref: (g(t, gid_ref), 0, 0)),  # b4
            ],
            out_specs=pl.BlockSpec((T, 1), lambda t, gid_ref: (t, 0)),
        ),
        compiler_params=pltpu.CompilerParams(
            dimension_semantics=("parallel",),       # shards tiles across v7x's 2 TCs
            vmem_limit_bytes=32 * 1024 * 1024),
    )(gid, aev_sched, w1, b1, w2, b2, w3, b3, w4, b4)

    # gather back to original atom order, drop intra-tile padding rows
    out = out_sched[:, 0][dest_rows]
    return out.reshape(sp_shape)


def init_params(key, aev_dim):
    """Deterministically initialize the 7 atomic MLPs and zero-pad them to a common
    width so they can be stacked along a species axis.  Invariant: padded weight rows /
    columns, padded biases and padded w4 entries are ZERO (CELU(0)=0), so padding never
    changes the result."""
    w1 = jnp.zeros((NUM_SPECIES, aev_dim, H1), jnp.float32)
    b1 = jnp.zeros((NUM_SPECIES, 1, H1), jnp.float32)
    w2 = jnp.zeros((NUM_SPECIES, H1, H2), jnp.float32)
    b2 = jnp.zeros((NUM_SPECIES, 1, H2), jnp.float32)
    w3 = jnp.zeros((NUM_SPECIES, H2, H3), jnp.float32)
    b3 = jnp.zeros((NUM_SPECIES, 1, H3), jnp.float32)
    w4 = jnp.zeros((NUM_SPECIES, 1, H3), jnp.float32)
    b4 = jnp.zeros((NUM_SPECIES, 1, 1), jnp.float32)

    keys = jax.random.split(key, NUM_SPECIES)
    for s, (h1, h2, h3) in enumerate(HIDDEN_SIZES):
        k = jax.random.split(keys[s], 8)

        def lin(kw, kb, fan_in, fan_out):
            bound = 1.0 / jnp.sqrt(fan_in)
            W = jax.random.uniform(kw, (fan_in, fan_out), jnp.float32, -bound, bound)
            b = jax.random.uniform(kb, (fan_out,), jnp.float32, -bound, bound)
            return W, b

        W1s, b1s = lin(k[0], k[1], aev_dim, h1)
        W2s, b2s = lin(k[2], k[3], h1, h2)
        W3s, b3s = lin(k[4], k[5], h2, h3)
        W4s, b4s = lin(k[6], k[7], h3, 1)

        w1 = w1.at[s, :, :h1].set(W1s)
        b1 = b1.at[s, 0, :h1].set(b1s)
        w2 = w2.at[s, :h1, :h2].set(W2s)
        b2 = b2.at[s, 0, :h2].set(b2s)
        w3 = w3.at[s, :h2, :h3].set(W3s)
        b3 = b3.at[s, 0, :h3].set(b3s)
        w4 = w4.at[s, 0, :h3].set(W4s[:, 0])
        b4 = b4.at[s, 0, 0].set(b4s[0])

    return dict(w1=w1, b1=b1, w2=w2, b2=b2, w3=w3, b3=b3, w4=w4, b4=b4)


def ani_interaction_ref(species, aev, params, compute_dtype=jnp.float32):
    """Pure-JAX reference matching the PyTorch forward semantics, with the same
    mixed-precision scheme as the kernel (matmul inputs in compute_dtype, f32 accum,
    f32 bias/CELU)."""
    hi = jax.lax.Precision.HIGHEST
    out = jnp.zeros(species.shape, jnp.float32)
    x = aev.astype(compute_dtype)
    for s in range(NUM_SPECIES):
        h = celu(jnp.dot(x, params["w1"][s].astype(compute_dtype),
                         preferred_element_type=jnp.float32, precision=hi)
                 + params["b1"][s, 0])
        h = celu(jnp.dot(h.astype(compute_dtype), params["w2"][s].astype(compute_dtype),
                         preferred_element_type=jnp.float32, precision=hi)
                 + params["b2"][s, 0])
        h = celu(jnp.dot(h.astype(compute_dtype), params["w3"][s].astype(compute_dtype),
                         preferred_element_type=jnp.float32, precision=hi)
                 + params["b3"][s, 0])
        e = jnp.sum(h * params["w4"][s, 0], axis=-1) + params["b4"][s, 0, 0]
        out = jnp.where(species == s, e, out)
    return out.astype(aev.dtype)


if __name__ == "__main__":
    key = jax.random.PRNGKey(0)
    k_param, k_species, k_aev, k_perm = jax.random.split(key, 4)

    # Small synthetic problem (real ANI: aev_dim ~ 1008 -> padded to 1024 in the wrapper).
    num_atoms = 300
    aev_dim = 200     # deliberately NOT a multiple of 128 -> exercises feature padding

    params = init_params(k_param, aev_dim)

    # Skewed species mix so at least one species spans multiple atom tiles.
    species = jnp.concatenate([
        jnp.zeros((160,), jnp.int32),
        jax.random.randint(k_species, (num_atoms - 160,), 0, NUM_SPECIES, dtype=jnp.int32),
    ])
    species = jax.random.permutation(k_perm, species)
    aev = jax.random.normal(k_aev, (num_atoms, aev_dim), dtype=jnp.float32)

    # 1) f32 matmul path: matches the PyTorch f32 semantics.
    out_f32 = ani_interaction_forward(species, aev, params,
                                      tile_atoms=128, compute_dtype=jnp.float32)
    out_f32 = jax.block_until_ready(out_f32)
    ref_f32 = ani_interaction_ref(species, aev, params, compute_dtype=jnp.float32)
    assert out_f32.shape == species.shape
    assert out_f32.dtype == aev.dtype
    assert jnp.allclose(out_f32, ref_f32, atol=1e-2, rtol=1e-2), "f32 mismatch vs reference"

    # 2) bf16 matmul path (perf default): compare against a precision-matched reference.
    out_bf16 = ani_interaction_forward(species, aev, params,
                                       tile_atoms=128, compute_dtype=jnp.bfloat16)
    out_bf16 = jax.block_until_ready(out_bf16)
    ref_bf16 = ani_interaction_ref(species, aev, params, compute_dtype=jnp.bfloat16)
    assert jnp.allclose(out_bf16, ref_bf16, atol=2e-2, rtol=2e-2), "bf16 mismatch vs reference"

    print("KERNEL_OK")
</pallas_src>

<mosaic_0001>
module attributes {stable_mosaic.version = 11 : i64} {
  func.func @kernel(%arg0: i32, %arg1: memref<10xi32, #tpu.memory_space<smem>>, %arg2: memref<128x256xf32, #tpu.memory_space<vmem>>, %arg3: memref<1x256x256xf32, #tpu.memory_space<vmem>>, %arg4: memref<1x1x256xf32, #tpu.memory_space<vmem>>, %arg5: memref<1x256x192xf32, #tpu.memory_space<vmem>>, %arg6: memref<1x1x192xf32, #tpu.memory_space<vmem>>, %arg7: memref<1x192x160xf32, #tpu.memory_space<vmem>>, %arg8: memref<1x1x160xf32, #tpu.memory_space<vmem>>, %arg9: memref<1x1x160xf32, #tpu.memory_space<vmem>>, %arg10: memref<1x1x1xf32, #tpu.memory_space<vmem>>, %arg11: memref<128x1xf32, #tpu.memory_space<vmem>>) attributes {dimension_semantics = [#tpu.dimension_semantics<parallel>], iteration_bounds = array<i64: 10>, scalar_prefetch = 1 : i64, scratch_operands = 0 : i64, tpu.core_type = #tpu.core_type<tc>, window_params = [{transform_indices = @transform_0, window_bounds = array<i64: 128, 256>}, {transform_indices = @transform_1, window_bounds = array<i64: 1, 256, 256>}, {transform_indices = @transform_2, window_bounds = array<i64: 1, 1, 256>}, {transform_indices = @transform_3, window_bounds = array<i64: 1, 256, 192>}, {transform_indices = @transform_4, window_bounds = array<i64: 1, 1, 192>}, {transform_indices = @transform_5, window_bounds = array<i64: 1, 192, 160>}, {transform_indices = @transform_6, window_bounds = array<i64: 1, 1, 160>}, {transform_indices = @transform_7, window_bounds = array<i64: 1, 1, 160>}, {transform_indices = @transform_8, window_bounds = array<i64: 1, 1, 1>}, {transform_indices = @transform_9, window_bounds = array<i64: 128, 1>}]} {
    %0 = arith.index_cast %arg0 : i32 to index
    %1 = memref.load %arg1[%0] : memref<10xi32, #tpu.memory_space<smem>>
    %c7_i32 = arith.constant 7 : i32
    %2 = arith.cmpi slt, %1, %c7_i32 : i32
    %3 = arith.extui %2 : i1 to i32
    %c0_i32 = arith.constant 0 : i32
    %4 = arith.cmpi ne, %3, %c0_i32 : i32
    scf.if %4 {
      %c0 = arith.constant 0 : index
      %c0_2 = arith.constant 0 : index
      %8 = vector.load %arg2[%c0, %c0_2] : memref<128x256xf32, #tpu.memory_space<vmem>>, vector<128x256xf32>
      %c0_3 = arith.constant 0 : index
      %c0_4 = arith.constant 0 : index
      %c0_5 = arith.constant 0 : index
      %9 = vector.load %arg3[%c0_3, %c0_4, %c0_5] : memref<1x256x256xf32, #tpu.memory_space<vmem>>, vector<1x256x256xf32>
      %10 = vector.shape_cast %9 : vector<1x256x256xf32> to vector<256x256xf32>
      %cst = arith.constant dense<0.000000e+00> : vector<128x256xf32>
      %11 = tpu.matmul %8, %10, %cst {dimension_numbers = #tpu.dot_dimension_numbers<[1], [0], [0], [1], [0, 0, 1, 1], [], []>} : vector<128x256xf32>, vector<256x256xf32>, vector<128x256xf32> -> vector<128x256xf32>
      %c0_6 = arith.constant 0 : index
      %c0_7 = arith.constant 0 : index
      %c0_8 = arith.constant 0 : index
      %12 = vector.load %arg4[%c0_6, %c0_7, %c0_8] : memref<1x1x256xf32, #tpu.memory_space<vmem>>, vector<1x1x256xf32>
      %13 = vector.shape_cast %12 : vector<1x1x256xf32> to vector<1x256xf32>
      %14 = vector.broadcast %13 : vector<1x256xf32> to vector<128x256xf32>
      %15 = arith.addf %11, %14 : vector<128x256xf32>
      %cst_9 = arith.constant 0.000000e+00 : f32
      %16 = vector.broadcast %cst_9 : f32 to vector<128x256xf32>
      %17 = arith.cmpf ogt, %15, %16 : vector<128x256xf32>
      %cst_10 = arith.constant 1.000000e+01 : f32
      %18 = vector.broadcast %cst_10 : f32 to vector<128x256xf32>
      %19 = arith.mulf %15, %18 : vector<128x256xf32>
      %20 = math.exp %19 : vector<128x256xf32>
      %cst_11 = arith.constant 1.000000e+00 : f32
      %21 = vector.broadcast %cst_11 : f32 to vector<128x256xf32>
      %22 = arith.subf %20, %21 : vector<128x256xf32>
      %cst_12 = arith.constant 1.000000e-01 : f32
      %23 = vector.broadcast %cst_12 : f32 to vector<128x256xf32>
      %24 = arith.mulf %23, %22 : vector<128x256xf32>
      %25 = arith.select %17, %15, %24 : vector<128x256xi1>, vector<128x256xf32>
      %c0_13 = arith.constant 0 : index
      %c0_14 = arith.constant 0 : index
      %c0_15 = arith.constant 0 : index
      %26 = vector.load %arg5[%c0_13, %c0_14, %c0_15] : memref<1x256x192xf32, #tpu.memory_space<vmem>>, vector<1x256x192xf32>
      %27 = vector.shape_cast %26 : vector<1x256x192xf32> to vector<256x192xf32>
      %cst_16 = arith.constant dense<0.000000e+00> : vector<128x192xf32>
      %28 = tpu.matmul %25, %27, %cst_16 {dimension_numbers = #tpu.dot_dimension_numbers<[1], [0], [0], [1], [0, 0, 1, 1], [], []>} : vector<128x256xf32>, vector<256x192xf32>, vector<128x192xf32> -> vector<128x192xf32>
      %c0_17 = arith.constant 0 : index
      %c0_18 = arith.constant 0 : index
      %c0_19 = arith.constant 0 : index
      %29 = vector.load %arg6[%c0_17, %c0_18, %c0_19] : memref<1x1x192xf32, #tpu.memory_space<vmem>>, vector<1x1x192xf32>
      %30 = vector.shape_cast %29 : vector<1x1x192xf32> to vector<1x192xf32>
      %31 = vector.broadcast %30 : vector<1x192xf32> to vector<128x192xf32>
      %32 = arith.addf %28, %31 : vector<128x192xf32>
      %cst_20 = arith.constant 0.000000e+00 : f32
      %33 = vector.broadcast %cst_20 : f32 to vector<128x192xf32>
      %34 = arith.cmpf ogt, %32, %33 : vector<128x192xf32>
      %cst_21 = arith.constant 1.000000e+01 : f32
      %35 = vector.broadcast %cst_21 : f32 to vector<128x192xf32>
      %36 = arith.mulf %32, %35 : vector<128x192xf32>
      %37 = math.exp %36 : vector<128x192xf32>
      %cst_22 = arith.constant 1.000000e+00 : f32
      %38 = vector.broadcast %cst_22 : f32 to vector<128x192xf32>
      %39 = arith.subf %37, %38 : vector<128x192xf32>
      %cst_23 = arith.constant 1.000000e-01 : f32
      %40 = vector.broadcast %cst_23 : f32 to vector<128x192xf32>
      %41 = arith.mulf %40, %39 : vector<128x192xf32>
      %42 = arith.select %34, %32, %41 : vector<128x192xi1>, vector<128x192xf32>
      %c0_24 = arith.constant 0 : index
      %c0_25 = arith.constant 0 : index
      %c0_26 = arith.constant 0 : index
      %43 = vector.load %arg7[%c0_24, %c0_25, %c0_26] : memref<1x192x160xf32, #tpu.memory_space<vmem>>, vector<1x192x160xf32>
      %44 = vector.shape_cast %43 : vector<1x192x160xf32> to vector<192x160xf32>
      %cst_27 = arith.constant dense<0.000000e+00> : vector<128x160xf32>
      %45 = tpu.matmul %42, %44, %cst_27 {dimension_numbers = #tpu.dot_dimension_numbers<[1], [0], [0], [1], [0, 0, 1, 1], [], []>} : vector<128x192xf32>, vector<192x160xf32>, vector<128x160xf32> -> vector<128x160xf32>
      %c0_28 = arith.constant 0 : index
      %c0_29 = arith.constant 0 : index
      %c0_30 = arith.constant 0 : index
      %46 = vector.load %arg8[%c0_28, %c0_29, %c0_30] : memref<1x1x160xf32, #tpu.memory_space<vmem>>, vector<1x1x160xf32>
      %47 = vector.shape_cast %46 : vector<1x1x160xf32> to vector<1x160xf32>
      %48 = vector.broadcast %47 : vector<1x160xf32> to vector<128x160xf32>
      %49 = arith.addf %45, %48 : vector<128x160xf32>
      %cst_31 = arith.constant 0.000000e+00 : f32
      %50 = vector.broadcast %cst_31 : f32 to vector<128x160xf32>
      %51 = arith.cmpf ogt, %49, %50 : vector<128x160xf32>
      %cst_32 = arith.constant 1.000000e+01 : f32
      %52 = vector.broadcast %cst_32 : f32 to vector<128x160xf32>
      %53 = arith.mulf %49, %52 : vector<128x160xf32>
      %54 = math.exp %53 : vector<128x160xf32>
      %cst_33 = arith.constant 1.000000e+00 : f32
      %55 = vector.broadcast %cst_33 : f32 to vector<128x160xf32>
      %56 = arith.subf %54, %55 : vector<128x160xf32>
      %cst_34 = arith.constant 1.000000e-01 : f32
      %57 = vector.broadcast %cst_34 : f32 to vector<128x160xf32>
      %58 = arith.mulf %57, %56 : vector<128x160xf32>
      %59 = arith.select %51, %49, %58 : vector<128x160xi1>, vector<128x160xf32>
      %c0_35 = arith.constant 0 : index
      %c0_36 = arith.constant 0 : index
      %c0_37 = arith.constant 0 : index
      %60 = vector.load %arg9[%c0_35, %c0_36, %c0_37] : memref<1x1x160xf32, #tpu.memory_space<vmem>>, vector<1x1x160xf32>
      %61 = vector.shape_cast %60 : vector<1x1x160xf32> to vector<1x160xf32>
      %62 = vector.broadcast %61 : vector<1x160xf32> to vector<128x160xf32>
      %63 = arith.mulf %59, %62 : vector<128x160xf32>
      %cst_38 = arith.constant dense<0.000000e+00> : vector<128xf32>
      %64 = vector.multi_reduction <add>, %63, %cst_38 [1] : vector<128x160xf32> to vector<128xf32>
      %65 = vector.shape_cast %64 : vector<128xf32> to vector<128x1xf32>
      %c0_39 = arith.constant 0 : index
      %c0_40 = arith.constant 0 : index
      %c0_41 = arith.constant 0 : index
      %66 = vector.load %arg10[%c0_39, %c0_40, %c0_41] : memref<1x1x1xf32, #tpu.memory_space<vmem>>, vector<1x1x1xf32>
      %67 = vector.shape_cast %66 : vector<1x1x1xf32> to vector<1x1xf32>
      %68 = vector.broadcast %67 : vector<1x1xf32> to vector<128x1xf32>
      %69 = arith.addf %65, %68 : vector<128x1xf32>
      %c0_42 = arith.constant 0 : index
      %c0_43 = arith.constant 0 : index
      %70 = vector.load %arg11[%c0_42, %c0_43] : memref<128x1xf32, #tpu.memory_space<vmem>>, vector<128x1xf32>
      tpu.vector_store %arg11[%c0_42, %c0_43], %69 {strides = array<i32>} : memref<128x1xf32, #tpu.memory_space<vmem>>, vector<128x1xf32>,
    } else {
    }
    %c7_i32_0 = arith.constant 7 : i32
    %5 = arith.cmpi sge, %1, %c7_i32_0 : i32
    %6 = arith.extui %5 : i1 to i32
    %c0_i32_1 = arith.constant 0 : i32
    %7 = arith.cmpi ne, %6, %c0_i32_1 : i32
    scf.if %7 {
      %cst = arith.constant 0.000000e+00 : f32
      %8 = vector.broadcast %cst : f32 to vector<128x1xf32>
      %c0 = arith.constant 0 : index
      %c0_2 = arith.constant 0 : index
      %9 = vector.load %arg11[%c0, %c0_2] : memref<128x1xf32, #tpu.memory_space<vmem>>, vector<128x1xf32>
      tpu.vector_store %arg11[%c0, %c0_2], %8 {strides = array<i32>} : memref<128x1xf32, #tpu.memory_space<vmem>>, vector<128x1xf32>,
    } else {
    }
    return
  }
  func.func @transform_0(%arg0: i32, %arg1: memref<10xi32, #tpu.memory_space<smem>>) -> (i32, i32) {
    %c0_i32 = arith.constant 0 : i32
    %c0_i32_0 = arith.constant 0 : i32
    return %arg0, %c0_i32 : i32, i32
  }
  func.func @transform_1(%arg0: i32, %arg1: memref<10xi32, #tpu.memory_space<smem>>) -> (i32, i32, i32) {
    %0 = arith.index_cast %arg0 : i32 to index
    %1 = memref.load %arg1[%0] : memref<10xi32, #tpu.memory_space<smem>>
    %c6_i32 = arith.constant 6 : i32
    %2 = arith.minsi %1, %c6_i32 : i32
    %c0_i32 = arith.constant 0 : i32
    %c0_i32_0 = arith.constant 0 : i32
    %c0_i32_1 = arith.constant 0 : i32
    return %2, %c0_i32, %c0_i32_0 : i32, i32, i32
  }
  func.func @transform_2(%arg0: i32, %arg1: memref<10xi32, #tpu.memory_space<smem>>) -> (i32, i32, i32) {
    %0 = arith.index_cast %arg0 : i32 to index
    %1 = memref.load %arg1[%0] : memref<10xi32, #tpu.memory_space<smem>>
    %c6_i32 = arith.constant 6 : i32
    %2 = arith.minsi %1, %c6_i32 : i32
    %c0_i32 = arith.constant 0 : i32
    %c0_i32_0 = arith.constant 0 : i32
    %c0_i32_1 = arith.constant 0 : i32
    return %2, %c0_i32, %c0_i32_0 : i32, i32, i32
  }
  func.func @transform_3(%arg0: i32, %arg1: memref<10xi32, #tpu.memory_space<smem>>) -> (i32, i32, i32) {
    %0 = arith.index_cast %arg0 : i32 to index
    %1 = memref.load %arg1[%0] : memref<10xi32, #tpu.memory_space<smem>>
    %c6_i32 = arith.constant 6 : i32
    %2 = arith.minsi %1, %c6_i32 : i32
    %c0_i32 = arith.constant 0 : i32
    %c0_i32_0 = arith.constant 0 : i32
    %c0_i32_1 = arith.constant 0 : i32
    return %2, %c0_i32, %c0_i32_0 : i32, i32, i32
  }
  func.func @transform_4(%arg0: i32, %arg1: memref<10xi32, #tpu.memory_space<smem>>) -> (i32, i32, i32) {
    %0 = arith.index_cast %arg0 : i32 to index
    %1 = memref.load %arg1[%0] : memref<10xi32, #tpu.memory_space<smem>>
    %c6_i32 = arith.constant 6 : i32
    %2 = arith.minsi %1, %c6_i32 : i32
    %c0_i32 = arith.constant 0 : i32
    %c0_i32_0 = arith.constant 0 : i32
    %c0_i32_1 = arith.constant 0 : i32
    return %2, %c0_i32, %c0_i32_0 : i32, i32, i32
  }
  func.func @transform_5(%arg0: i32, %arg1: memref<10xi32, #tpu.memory_space<smem>>) -> (i32, i32, i32) {
    %0 = arith.index_cast %arg0 : i32 to index
    %1 = memref.load %arg1[%0] : memref<10xi32, #tpu.memory_space<smem>>
    %c6_i32 = arith.constant 6 : i32
    %2 = arith.minsi %1, %c6_i32 : i32
    %c0_i32 = arith.constant 0 : i32
    %c0_i32_0 = arith.constant 0 : i32
    %c0_i32_1 = arith.constant 0 : i32
    return %2, %c0_i32, %c0_i32_0 : i32, i32, i32
  }
  func.func @transform_6(%arg0: i32, %arg1: memref<10xi32, #tpu.memory_space<smem>>) -> (i32, i32, i32) {
    %0 = arith.index_cast %arg0 : i32 to index
    %1 = memref.load %arg1[%0] : memref<10xi32, #tpu.memory_space<smem>>
    %c6_i32 = arith.constant 6 : i32
    %2 = arith.minsi %1, %c6_i32 : i32
    %c0_i32 = arith.constant 0 : i32
    %c0_i32_0 = arith.constant 0 : i32
    %c0_i32_1 = arith.constant 0 : i32
    return %2, %c0_i32, %c0_i32_0 : i32, i32, i32
  }
  func.func @transform_7(%arg0: i32, %arg1: memref<10xi32, #tpu.memory_space<smem>>) -> (i32, i32, i32) {
    %0 = arith.index_cast %arg0 : i32 to index
    %1 = memref.load %arg1[%0] : memref<10xi32, #tpu.memory_space<smem>>
    %c6_i32 = arith.constant 6 : i32
    %2 = arith.minsi %1, %c6_i32 : i32
    %c0_i32 = arith.constant 0 : i32
    %c0_i32_0 = arith.constant 0 : i32
    %c0_i32_1 = arith.constant 0 : i32
    return %2, %c0_i32, %c0_i32_0 : i32, i32, i32
  }
  func.func @transform_8(%arg0: i32, %arg1: memref<10xi32, #tpu.memory_space<smem>>) -> (i32, i32, i32) {
    %0 = arith.index_cast %arg0 : i32 to index
    %1 = memref.load %arg1[%0] : memref<10xi32, #tpu.memory_space<smem>>
    %c6_i32 = arith.constant 6 : i32
    %2 = arith.minsi %1, %c6_i32 : i32
    %c0_i32 = arith.constant 0 : i32
    %c0_i32_0 = arith.constant 0 : i32
    %c0_i32_1 = arith.constant 0 : i32
    return %2, %c0_i32, %c0_i32_0 : i32, i32, i32
  }
  func.func @transform_9(%arg0: i32, %arg1: memref<10xi32, #tpu.memory_space<smem>>) -> (i32, i32) {
    %c0_i32 = arith.constant 0 : i32
    %c0_i32_0 = arith.constant 0 : i32
    return %arg0, %c0_i32 : i32, i32
  }
}

</mosaic_0001>

<llo_original>
// kernel: tpu_custom_call.1
$region0: #{tpu_custom_call.1}
  #allocation0 [shape = 'u32[]', space=smem, size = 0x4, offset = 0x4, fixed_abs, tag = 'smem constant byte address 0x4 - core index']
  #allocation1 [shape = 'u32[144,128]{1,0:T(1,128)}', space=vmem, size = 0x12000, scoped, tag = 'internal scratch']
  #allocation2 [shape = 's32[1]{0}', space=sflag, size = 0x4, scoped, tag = 'scoped memory for tpu_custom_call.1']
  #allocation3 [shape = 'u8[512]{0}', space=smem, size = 0x200, scoped, tag = 'prefetched SMEM operand 0']
  %s0 = inlined_call_operand.vmem [shape: s32[10], index: 0, kind: input, shape index: {}]
  %s1 = inlined_call_operand.vmem [shape: f32[1280,256], index: 1, kind: input, shape index: {}]
  %s2 = inlined_call_operand.vmem [shape: f32[7,256,256], index: 2, kind: input, shape index: {}]
  %s3 = inlined_call_operand.vmem [shape: f32[7,1,256], index: 3, kind: input, shape index: {}]
  %s4 = inlined_call_operand.vmem [shape: f32[7,256,192], index: 4, kind: input, shape index: {}]
  %s5 = inlined_call_operand.vmem [shape: f32[7,1,192], index: 5, kind: input, shape index: {}]
  %s6 = inlined_call_operand.vmem [shape: f32[7,192,160], index: 6, kind: input, shape index: {}]
  %s7 = inlined_call_operand.vmem [shape: f32[7,1,160], index: 7, kind: input, shape index: {}]
  %s8 = inlined_call_operand.vmem [shape: f32[7,1,160], index: 8, kind: input, shape index: {}]
  %s9 = inlined_call_operand.vmem [shape: f32[7,1,1], index: 9, kind: input, shape index: {}]
  %s10 = inlined_call_operand.vmem [shape: f32[1280,1], index: 10, kind: output, shape index: {}]
  %s11 = sld [smem:[#allocation0]]
  $region77: #{tpu_custom_call.1} parent=0
    _
  %s13 = ssub.s32 1, %s11
  %s14 = scalar_select 0, %s13, %s11
  %s15 = sshll.u32 %s0, 4
  %s16 = int_to_ptr.vmem [resolvable:$true] %s15
  %18 = dma.vmem_to_smem %s16, 16, [#allocation3], [#allocation2]
  %19 = dma.done [#allocation2], 16
  %20 = sfence
  loop: start=0, step=1, limit=12
  $region2: #{tpu_custom_call.1} parent=0 // loop_pre_header
    _
  $region3: #{tpu_custom_call.1} parent=0 // loop_header
    %s22 = sphi 0, %s26
    %p23 = scmp.ge.s32.totalorder %s22, 12
    %s32 = sphi 0, %s34
    %s35 = sphi 0, %s32
    %s36 = sphi 0, %s35
    %s52 = sphi 0, %s36
    %s64 = sphi 0, %s66
    %s67 = sphi 0, %s64
    %s68 = sphi 0, %s67
    %s84 = sphi 0, %s68
    %s96 = sphi 0, %s98
    %s99 = sphi 0, %s96
    %s100 = sphi 0, %s99
    %s116 = sphi 0, %s100
    %s128 = sphi 0, %s130
    %s131 = sphi 0, %s128
    %s132 = sphi 0, %s131
    %s148 = sphi 0, %s132
    %s160 = sphi 0, %s162
    %s163 = sphi 0, %s160
    %s164 = sphi 0, %s163
    %s180 = sphi 0, %s164
    %s192 = sphi 0, %s194
    %s195 = sphi 0, %s192
    %s196 = sphi 0, %s195
    %s212 = sphi 0, %s196
    %s224 = sphi 0, %s226
    %s227 = sphi 0, %s224
    %s228 = sphi 0, %s227
    %s244 = sphi 0, %s228
    %s256 = sphi 0, %s258
    %s259 = sphi 0, %s256
    %s260 = sphi 0, %s259
    %s276 = sphi 0, %s260
    %s288 = sphi 0, %s290
    %s291 = sphi 0, %s288
    %s292 = sphi 0, %s291
    %s308 = sphi 0, %s292
    %s314 = sphi 0, %s316
    %s317 = sphi 0, %s314
    %s318 = sphi 0, %s317
    %s334 = sphi 0, %s318
  $region4: #{tpu_custom_call.1} parent=0 // loop_header_branch
    %25 = sbr.rel (%p23) target = $region8
  $region5: #{tpu_custom_call.1} parent=0 // loop_body
    %s27 = ssub.s32 %s22, 1
    %s28 = ssub.s32 %s22, 2
    %s29 = sadd.s32 %s22, 1
    %s30 = ssub.s32 %s22, %s29
    %p31 = scmp.eq.s32.totalorder %s30, 0
    %s33 = sadd.s32 %s32, 1
    %s34 = scalar_select %p31, %s32, %s33
    %p37 = pneg %p31
    %p38 = scmp.eq.s32.totalorder %s22, 9
    %p39 = por %p37, %p38
    %p40 = scmp.ne.s32.totalorder %s32, %s35
    %p41 = scmp.eq.s32.totalorder %s22, 0
    %p42 = por %p40, %p41
    %p43 = scmp.ne.s32.totalorder %s32, %s35
    %p44 = scmp.eq.s32.totalorder %s27, 9
    %p45 = por %p43, %p44
    %p46 = scmp.ne.s32.totalorder %s35, %s36
    %p47 = scmp.eq.s32.totalorder %s27, 0
    %p48 = por %p46, %p47
    %p49 = scmp.ne.s32.totalorder %s35, %s36
    %p50 = scmp.eq.s32.totalorder %s28, 9
    %p51 = por %p49, %p50
    %p53 = scmp.ne.s32.totalorder %s36, %s52
    %p54 = scmp.eq.s32.totalorder %s28, 0
    %p55 = por %p53, %p54
    %s56 = sld [smem:[#allocation3 + %s22]]
    %p57 = scmp.lt.s32.totalorder %s56, 6
    %s58 = scalar_select %p57, %s56, 6
    %s59 = sld [smem:[#allocation3 + %s29]]
    %p60 = scmp.lt.s32.totalorder %s59, 6
    %s61 = scalar_select %p60, %s59, 6
    %s62 = ssub.s32 %s58, %s61
    %p63 = scmp.eq.s32.totalorder %s62, 0
    %s65 = sadd.s32 %s64, 1
    %s66 = scalar_select %p63, %s64, %s65
    %p69 = pneg %p63
    %p70 = scmp.eq.s32.totalorder %s22, 9
    %p71 = por %p69, %p70
    %p72 = scmp.ne.s32.totalorder %s64, %s67
    %p73 = scmp.eq.s32.totalorder %s22, 0
    %p74 = por %p72, %p73
    %p75 = scmp.ne.s32.totalorder %s64, %s67
    %p76 = scmp.eq.s32.totalorder %s27, 9
    %p77 = por %p75, %p76
    %p78 = scmp.ne.s32.totalorder %s67, %s68
    %p79 = scmp.eq.s32.totalorder %s27, 0
    %p80 = por %p78, %p79
    %p81 = scmp.ne.s32.totalorder %s67, %s68
    %p82 = scmp.eq.s32.totalorder %s28, 9
    %p83 = por %p81, %p82
    %p85 = scmp.ne.s32.totalorder %s68, %s84
    %p86 = scmp.eq.s32.totalorder %s28, 0
    %p87 = por %p85, %p86
    %s88 = sld [smem:[#allocation3 + %s22]]
    %p89 = scmp.lt.s32.totalorder %s88, 6
    %s90 = scalar_select %p89, %s88, 6
    %s91 = sld [smem:[#allocation3 + %s29]]
    %p92 = scmp.lt.s32.totalorder %s91, 6
    %s93 = scalar_select %p92, %s91, 6
    %s94 = ssub.s32 %s90, %s93
    %p95 = scmp.eq.s32.totalorder %s94, 0
    %s97 = sadd.s32 %s96, 1
    %s98 = scalar_select %p95, %s96, %s97
    %p101 = pneg %p95
    %p102 = scmp.eq.s32.totalorder %s22, 9
    %p103 = por %p101, %p102
    %p104 = scmp.ne.s32.totalorder %s96, %s99
    %p105 = scmp.eq.s32.totalorder %s22, 0
    %p106 = por %p104, %p105
    %p107 = scmp.ne.s32.totalorder %s96, %s99
    %p108 = scmp.eq.s32.totalorder %s27, 9
    %p109 = por %p107, %p108
    %p110 = scmp.ne.s32.totalorder %s99, %s100
    %p111 = scmp.eq.s32.totalorder %s27, 0
    %p112 = por %p110, %p111
    %p113 = scmp.ne.s32.totalorder %s99, %s100
    %p114 = scmp.eq.s32.totalorder %s28, 9
    %p115 = por %p113, %p114
    %p117 = scmp.ne.s32.totalorder %s100, %s116
    %p118 = scmp.eq.s32.totalorder %s28, 0
    %p119 = por %p117, %p118
    %s120 = sld [smem:[#allocation3 + %s22]]
    %p121 = scmp.lt.s32.totalorder %s120, 6
    %s122 = scalar_select %p121, %s120, 6
    %s123 = sld [smem:[#allocation3 + %s29]]
    %p124 = scmp.lt.s32.totalorder %s123, 6
    %s125 = scalar_select %p124, %s123, 6
    %s126 = ssub.s32 %s122, %s125
    %p127 = scmp.eq.s32.totalorder %s126, 0
    %s129 = sadd.s32 %s128, 1
    %s130 = scalar_select %p127, %s128, %s129
    %p133 = pneg %p127
    %p134 = scmp.eq.s32.totalorder %s22, 9
    %p135 = por %p133, %p134
    %p136 = scmp.ne.s32.totalorder %s128, %s131
    %p137 = scmp.eq.s32.totalorder %s22, 0
    %p138 = por %p136, %p137
    %p139 = scmp.ne.s32.totalorder %s128, %s131
    %p140 = scmp.eq.s32.totalorder %s27, 9
    %p141 = por %p139, %p140
    %p142 = scmp.ne.s32.totalorder %s131, %s132
    %p143 = scmp.eq.s32.totalorder %s27, 0
    %p144 = por %p142, %p143
    %p145 = scmp.ne.s32.totalorder %s131, %s132
    %p146 = scmp.eq.s32.totalorder %s28, 9
    %p147 = por %p145, %p146
    %p149 = scmp.ne.s32.totalorder %s132, %s148
    %p150 = scmp.eq.s32.totalorder %s28, 0
    %p151 = por %p149, %p150
    %s152 = sld [smem:[#allocation3 + %s22]]
    %p153 = scmp.lt.s32.totalorder %s152, 6
    %s154 = scalar_select %p153, %s152, 6
    %s155 = sld [smem:[#allocation3 + %s29]]
    %p156 = scmp.lt.s32.totalorder %s155, 6
    %s157 = scalar_select %p156, %s155, 6
    %s158 = ssub.s32 %s154, %s157
    %p159 = scmp.eq.s32.totalorder %s158, 0
    %s161 = sadd.s32 %s160, 1
    %s162 = scalar_select %p159, %s160, %s161
    %p165 = pneg %p159
    %p166 = scmp.eq.s32.totalorder %s22, 9
    %p167 = por %p165, %p166
    %p168 = scmp.ne.s32.totalorder %s160, %s163
    %p169 = scmp.eq.s32.totalorder %s22, 0
    %p170 = por %p168, %p169
    %p171 = scmp.ne.s32.totalorder %s160, %s163
    %p172 = scmp.eq.s32.totalorder %s27, 9
    %p173 = por %p171, %p172
    %p174 = scmp.ne.s32.totalorder %s163, %s164
    %p175 = scmp.eq.s32.totalorder %s27, 0
    %p176 = por %p174, %p175
    %p177 = scmp.ne.s32.totalorder %s163, %s164
    %p178 = scmp.eq.s32.totalorder %s28, 9
    %p179 = por %p177, %p178
    %p181 = scmp.ne.s32.totalorder %s164, %s180
    %p182 = scmp.eq.s32.totalorder %s28, 0
    %p183 = por %p181, %p182
    %s184 = sld [smem:[#allocation3 + %s22]]
    %p185 = scmp.lt.s32.totalorder %s184, 6
    %s186 = scalar_select %p185, %s184, 6
    %s187 = sld [smem:[#allocation3 + %s29]]
    %p188 = scmp.lt.s32.totalorder %s187, 6
    %s189 = scalar_select %p188, %s187, 6
    %s190 = ssub.s32 %s186, %s189
    %p191 = scmp.eq.s32.totalorder %s190, 0
    %s193 = sadd.s32 %s192, 1
    %s194 = scalar_select %p191, %s192, %s193
    %p197 = pneg %p191
    %p198 = scmp.eq.s32.totalorder %s22, 9
    %p199 = por %p197, %p198
    %p200 = scmp.ne.s32.totalorder %s192, %s195
    %p201 = scmp.eq.s32.totalorder %s22, 0
    %p202 = por %p200, %p201
    %p203 = scmp.ne.s32.totalorder %s192, %s195
    %p204 = scmp.eq.s32.totalorder %s27, 9
    %p205 = por %p203, %p204
    %p206 = scmp.ne.s32.totalorder %s195, %s196
    %p207 = scmp.eq.s32.totalorder %s27, 0
    %p208 = por %p206, %p207
    %p209 = scmp.ne.s32.totalorder %s195, %s196
    %p210 = scmp.eq.s32.totalorder %s28, 9
    %p211 = por %p209, %p210
    %p213 = scmp.ne.s32.totalorder %s196, %s212
    %p214 = scmp.eq.s32.totalorder %s28, 0
    %p215 = por %p213, %p214
    %s216 = sld [smem:[#allocation3 + %s22]]
    %p217 = scmp.lt.s32.totalorder %s216, 6
    %s218 = scalar_select %p217, %s216, 6
    %s219 = sld [smem:[#allocation3 + %s29]]
    %p220 = scmp.lt.s32.totalorder %s219, 6
    %s221 = scalar_select %p220, %s219, 6
    %s222 = ssub.s32 %s218, %s221
    %p223 = scmp.eq.s32.totalorder %s222, 0
    %s225 = sadd.s32 %s224, 1
    %s226 = scalar_select %p223, %s224, %s225
    %p229 = pneg %p223
    %p230 = scmp.eq.s32.totalorder %s22, 9
    %p231 = por %p229, %p230
    %p232 = scmp.ne.s32.totalorder %s224, %s227
    %p233 = scmp.eq.s32.totalorder %s22, 0
    %p234 = por %p232, %p233
    %p235 = scmp.ne.s32.totalorder %s224, %s227
    %p236 = scmp.eq.s32.totalorder %s27, 9
    %p237 = por %p235, %p236
    %p238 = scmp.ne.s32.totalorder %s227, %s228
    %p239 = scmp.eq.s32.totalorder %s27, 0
    %p240 = por %p238, %p239
    %p241 = scmp.ne.s32.totalorder %s227, %s228
    %p242 = scmp.eq.s32.totalorder %s28, 9
    %p243 = por %p241, %p242
    %p245 = scmp.ne.s32.totalorder %s228, %s244
    %p246 = scmp.eq.s32.totalorder %s28, 0
    %p247 = por %p245, %p246
    %s248 = sld [smem:[#allocation3 + %s22]]
    %p249 = scmp.lt.s32.totalorder %s248, 6
    %s250 = scalar_select %p249, %s248, 6
    %s251 = sld [smem:[#allocation3 + %s29]]
    %p252 = scmp.lt.s32.totalorder %s251, 6
    %s253 = scalar_select %p252, %s251, 6
    %s254 = ssub.s32 %s250, %s253
    %p255 = scmp.eq.s32.totalorder %s254, 0
    %s257 = sadd.s32 %s256, 1
    %s258 = scalar_select %p255, %s256, %s257
    %p261 = pneg %p255
    %p262 = scmp.eq.s32.totalorder %s22, 9
    %p263 = por %p261, %p262
    %p264 = scmp.ne.s32.totalorder %s256, %s259
    %p265 = scmp.eq.s32.totalorder %s22, 0
    %p266 = por %p264, %p265
    %p267 = scmp.ne.s32.totalorder %s256, %s259
    %p268 = scmp.eq.s32.totalorder %s27, 9
    %p269 = por %p267, %p268
    %p270 = scmp.ne.s32.totalorder %s259, %s260
    %p271 = scmp.eq.s32.totalorder %s27, 0
    %p272 = por %p270, %p271
    %p273 = scmp.ne.s32.totalorder %s259, %s260
    %p274 = scmp.eq.s32.totalorder %s28, 9
    %p275 = por %p273, %p274
    %p277 = scmp.ne.s32.totalorder %s260, %s276
    %p278 = scmp.eq.s32.totalorder %s28, 0
    %p279 = por %p277, %p278
    %s280 = sld [smem:[#allocation3 + %s22]]
    %p281 = scmp.lt.s32.totalorder %s280, 6
    %s282 = scalar_select %p281, %s280, 6
    %s283 = sld [smem:[#allocation3 + %s29]]
    %p284 = scmp.lt.s32.totalorder %s283, 6
    %s285 = scalar_select %p284, %s283, 6
    %s286 = ssub.s32 %s282, %s285
    %p287 = scmp.eq.s32.totalorder %s286, 0
    %s289 = sadd.s32 %s288, 1
    %s290 = scalar_select %p287, %s288, %s289
    %p293 = pneg %p287
    %p294 = scmp.eq.s32.totalorder %s22, 9
    %p295 = por %p293, %p294
    %p296 = scmp.ne.s32.totalorder %s288, %s291
    %p297 = scmp.eq.s32.totalorder %s22, 0
    %p298 = por %p296, %p297
    %p299 = scmp.ne.s32.totalorder %s288, %s291
    %p300 = scmp.eq.s32.totalorder %s27, 9
    %p301 = por %p299, %p300
    %p302 = scmp.ne.s32.totalorder %s291, %s292
    %p303 = scmp.eq.s32.totalorder %s27, 0
    %p304 = por %p302, %p303
    %p305 = scmp.ne.s32.totalorder %s291, %s292
    %p306 = scmp.eq.s32.totalorder %s28, 9
    %p307 = por %p305, %p306
    %p309 = scmp.ne.s32.totalorder %s292, %s308
    %p310 = scmp.eq.s32.totalorder %s28, 0
    %p311 = por %p309, %p310
    %s312 = ssub.s32 %s22, %s29
    %p313 = scmp.eq.s32.totalorder %s312, 0
    %s315 = sadd.s32 %s314, 1
    %s316 = scalar_select %p313, %s314, %s315
    %p319 = pneg %p313
    %p320 = scmp.eq.s32.totalorder %s22, 9
    %p321 = por %p319, %p320
    %p322 = scmp.ne.s32.totalorder %s314, %s317
    %p323 = scmp.eq.s32.totalorder %s22, 0
    %p324 = por %p322, %p323
    %p325 = scmp.ne.s32.totalorder %s314, %s317
    %p326 = scmp.eq.s32.totalorder %s27, 9
    %p327 = por %p325, %p326
    %p328 = scmp.ne.s32.totalorder %s317, %s318
    %p329 = scmp.eq.s32.totalorder %s27, 0
    %p330 = por %p328, %p329
    %p331 = scmp.ne.s32.totalorder %s317, %s318
    %p332 = scmp.eq.s32.totalorder %s28, 9
    %p333 = por %p331, %p332
    %p335 = scmp.ne.s32.totalorder %s318, %s334
    %p336 = scmp.eq.s32.totalorder %s28, 0
    %p337 = por %p335, %p336
    %p338 = scmp.le.s32.totalorder 1, %s22
    %p339 = scmp.lt.s32.totalorder %s22, 11
    %p340 = pnand %p338, %p339
    %p341 = pneg %p340
    // Predicated region
    $region9: #{tpu_custom_call.1} parent=5 // pred_check
      _
    $region10: #{tpu_custom_call.1} parent=5 // pred_check_branch
      %343 = sbr.rel (%p340) target = $region12
    $region11: #{tpu_custom_call.1} parent=5 // pred_region
      %s344 = ssub.s32 %s22, 1
    $region12: #{tpu_custom_call.1} parent=5 // pred_fallthru
      _
    %p345 = scmp.lt.s32.totalorder %s22, 10
    // Predicated region
    $region13: #{tpu_custom_call.1} parent=5 // pred_check
      %p346 = pneg %p345
    $region14: #{tpu_custom_call.1} parent=5 // pred_check_branch
      %348 = sbr.rel (%p346) target = $region16
    $region15: #{tpu_custom_call.1} parent=5 // pred_region
      // Predicated region
      $region17: #{tpu_custom_call.1} parent=15 // pred_check
        %p349 = pneg %p42
      $region18: #{tpu_custom_call.1} parent=15 // pred_check_branch
        %351 = sbr.rel (%p349) target = $region20
      $region19: #{tpu_custom_call.1} parent=15 // pred_region
        %s352 = smul.u32 16, %s22
        %p353 = scmp.lt.s32.totalorder %s352, 159
        %s354 = scalar_select %p353, %s352, 159
        %s355 = smul.addr %s354, 2
        %s356 = smul.addr %s355, 8
        %s357 = scalar_lea.vmem %s1, %s356
        %s358 = smul.u32 16, %s22
      $region20: #{tpu_custom_call.1} parent=15 // pred_fallthru
        _
      // Predicated region
      $region21: #{tpu_custom_call.1} parent=15 // pred_check
        %p359 = pneg %p74
      $region22: #{tpu_custom_call.1} parent=15 // pred_check_branch
        %361 = sbr.rel (%p359) target = $region24
      $region23: #{tpu_custom_call.1} parent=15 // pred_region
        %s362 = sld [smem:[#allocation3 + %s22]]
        %p363 = scmp.lt.s32.totalorder %s362, 6
        %s364 = scalar_select %p363, %s362, 6
        %p365 = scmp.lt.s32.totalorder %s364, 6
        %s366 = scalar_select %p365, %s364, 6
        %s367 = smul.addr %s366, 64
        %s368 = smul.addr %s367, 8
        %s369 = scalar_lea.vmem %s2, %s368
        %s370 = sld [smem:[#allocation3 + %s22]]
        %p371 = scmp.lt.s32.totalorder %s370, 6
        %s372 = scalar_select %p371, %s370, 6
      $region24: #{tpu_custom_call.1} parent=15 // pred_fallthru
        _
      // Predicated region
      $region25: #{tpu_custom_call.1} parent=15 // pred_check
        %p373 = pneg %p106
      $region26: #{tpu_custom_call.1} parent=15 // pred_check_branch
        %375 = sbr.rel (%p373) target = $region28
      $region27: #{tpu_custom_call.1} parent=15 // pred_region
        %s376 = sld [smem:[#allocation3 + %s22]]
        %p377 = scmp.lt.s32.totalorder %s376, 6
        %s378 = scalar_select %p377, %s376, 6
        %p379 = scmp.lt.s32.totalorder %s378, 6
        %s380 = scalar_select %p379, %s378, 6
        %s381 = smul.addr %s380, 2
        %s382 = scalar_lea.vmem %s3, %s381
        %s383 = sld [smem:[#allocation3 + %s22]]
        %p384 = scmp.lt.s32.totalorder %s383, 6
        %s385 = scalar_select %p384, %s383, 6
      $region28: #{tpu_custom_call.1} parent=15 // pred_fallthru
        _
      // Predicated region
      $region29: #{tpu_custom_call.1} parent=15 // pred_check
        %p386 = pneg %p138
      $region30: #{tpu_custom_call.1} parent=15 // pred_check_branch
        %388 = sbr.rel (%p386) target = $region32
      $region31: #{tpu_custom_call.1} parent=15 // pred_region
        %s389 = sld [smem:[#allocation3 + %s22]]
        %p390 = scmp.lt.s32.totalorder %s389, 6
        %s391 = scalar_select %p390, %s389, 6
        %p392 = scmp.lt.s32.totalorder %s391, 6
        %s393 = scalar_select %p392, %s391, 6
        %s394 = smul.addr %s393, 64
        %s395 = smul.addr %s394, 8
        %s396 = scalar_lea.vmem %s4, %s395
        %s397 = sld [smem:[#allocation3 + %s22]]
        %p398 = scmp.lt.s32.totalorder %s397, 6
        %s399 = scalar_select %p398, %s397, 6
      $region32: #{tpu_custom_call.1} parent=15 // pred_fallthru
        _
      // Predicated region
      $region33: #{tpu_custom_call.1} parent=15 // pred_check
        %p400 = pneg %p170
      $region34: #{tpu_custom_call.1} parent=15 // pred_check_branch
        %402 = sbr.rel (%p400) target = $region36
      $region35: #{tpu_custom_call.1} parent=15 // pred_region
        %s403 = sld [smem:[#allocation3 + %s22]]
        %p404 = scmp.lt.s32.totalorder %s403, 6
        %s405 = scalar_select %p404, %s403, 6
        %p406 = scmp.lt.s32.totalorder %s405, 6
        %s407 = scalar_select %p406, %s405, 6
        %s408 = smul.addr %s407, 2
        %s409 = scalar_lea.vmem %s5, %s408
        %s410 = sld [smem:[#allocation3 + %s22]]
        %p411 = scmp.lt.s32.totalorder %s410, 6
        %s412 = scalar_select %p411, %s410, 6
      $region36: #{tpu_custom_call.1} parent=15 // pred_fallthru
        _
      // Predicated region
      $region37: #{tpu_custom_call.1} parent=15 // pred_check
        %p413 = pneg %p202
      $region38: #{tpu_custom_call.1} parent=15 // pred_check_branch
        %415 = sbr.rel (%p413) target = $region40
      $region39: #{tpu_custom_call.1} parent=15 // pred_region
        %s416 = sld [smem:[#allocation3 + %s22]]
        %p417 = scmp.lt.s32.totalorder %s416, 6
        %s418 = scalar_select %p417, %s416, 6
        %p419 = scmp.lt.s32.totalorder %s418, 6
        %s420 = scalar_select %p419, %s418, 6
        %s421 = smul.addr %s420, 48
        %s422 = smul.addr %s421, 8
        %s423 = scalar_lea.vmem %s6, %s422
        %s424 = sld [smem:[#allocation3 + %s22]]
        %p425 = scmp.lt.s32.totalorder %s424, 6
        %s426 = scalar_select %p425, %s424, 6
      $region40: #{tpu_custom_call.1} parent=15 // pred_fallthru
        _
      // Predicated region
      $region41: #{tpu_custom_call.1} parent=15 // pred_check
        %p427 = pneg %p234
      $region42: #{tpu_custom_call.1} parent=15 // pred_check_branch
        %429 = sbr.rel (%p427) target = $region44
      $region43: #{tpu_custom_call.1} parent=15 // pred_region
        %s430 = sld [smem:[#allocation3 + %s22]]
        %p431 = scmp.lt.s32.totalorder %s430, 6
        %s432 = scalar_select %p431, %s430, 6
        %p433 = scmp.lt.s32.totalorder %s432, 6
        %s434 = scalar_select %p433, %s432, 6
        %s435 = smul.addr %s434, 2
        %s436 = scalar_lea.vmem %s7, %s435
        %s437 = sld [smem:[#allocation3 + %s22]]
        %p438 = scmp.lt.s32.totalorder %s437, 6
        %s439 = scalar_select %p438, %s437, 6
      $region44: #{tpu_custom_call.1} parent=15 // pred_fallthru
        _
      // Predicated region
      $region45: #{tpu_custom_call.1} parent=15 // pred_check
        %p440 = pneg %p266
      $region46: #{tpu_custom_call.1} parent=15 // pred_check_branch
        %442 = sbr.rel (%p440) target = $region48
      $region47: #{tpu_custom_call.1} parent=15 // pred_region
        %s443 = sld [smem:[#allocation3 + %s22]]
        %p444 = scmp.lt.s32.totalorder %s443, 6
        %s445 = scalar_select %p444, %s443, 6
        %p446 = scmp.lt.s32.totalorder %s445, 6
        %s447 = scalar_select %p446, %s445, 6
        %s448 = smul.addr %s447, 2
        %s449 = scalar_lea.vmem %s8, %s448
        %s450 = sld [smem:[#allocation3 + %s22]]
        %p451 = scmp.lt.s32.totalorder %s450, 6
        %s452 = scalar_select %p451, %s450, 6
      $region48: #{tpu_custom_call.1} parent=15 // pred_fallthru
        _
      // Predicated region
      $region49: #{tpu_custom_call.1} parent=15 // pred_check
        %p453 = pneg %p298
      $region50: #{tpu_custom_call.1} parent=15 // pred_check_branch
        %455 = sbr.rel (%p453) target = $region52
      $region51: #{tpu_custom_call.1} parent=15 // pred_region
        %s456 = sld [smem:[#allocation3 + %s22]]
        %p457 = scmp.lt.s32.totalorder %s456, 6
        %s458 = scalar_select %p457, %s456, 6
        %p459 = scmp.lt.s32.totalorder %s458, 6
        %s460 = scalar_select %p459, %s458, 6
        %s461 = scalar_lea.vmem %s9, %s460
        %s462 = sld [smem:[#allocation3 + %s22]]
        %p463 = scmp.lt.s32.totalorder %s462, 6
        %s464 = scalar_select %p463, %s462, 6
      $region52: #{tpu_custom_call.1} parent=15 // pred_fallthru
        _
    $region16: #{tpu_custom_call.1} parent=5 // pred_fallthru
      _
    %p465 = scmp.le.s32.totalorder 1, %s22
    %p466 = scmp.lt.s32.totalorder %s22, 11
    %p467 = pnand %p465, %p466
    %p468 = pneg %p467
    // Predicated region
    $region53: #{tpu_custom_call.1} parent=5 // pred_check
      _
    $region54: #{tpu_custom_call.1} parent=5 // pred_check_branch
      %470 = sbr.rel (%p467) target = $region56
    $region55: #{tpu_custom_call.1} parent=5 // pred_region
      %s471 = ssub.s32 %s22, 1
      %s472 = smul.u32 16, %s27
      %p473 = scmp.lt.s32.totalorder %s472, 159
      %s474 = scalar_select %p473, %s472, 159
      %s475 = smul.addr %s474, 2
      %s476 = smul.addr %s475, 8
      %s477 = scalar_lea.vmem %s1, %s476
      %p478 = pneg %p48
      %p479 = pneg %p45
      %s480 = sld [smem:[#allocation3 + %s27]]
      %p481 = scmp.lt.s32.totalorder %s480, 6
      %s482 = scalar_select %p481, %s480, 6
      %p483 = scmp.lt.s32.totalorder %s482, 6
      %s484 = scalar_select %p483, %s482, 6
      %s485 = smul.addr %s484, 64
      %s486 = smul.addr %s485, 8
      %s487 = scalar_lea.vmem %s2, %s486
      %p488 = pneg %p80
      %p489 = pneg %p77
      %s490 = sld [smem:[#allocation3 + %s27]]
      %p491 = scmp.lt.s32.totalorder %s490, 6
      %s492 = scalar_select %p491, %s490, 6
      %p493 = scmp.lt.s32.totalorder %s492, 6
      %s494 = scalar_select %p493, %s492, 6
      %s495 = smul.addr %s494, 2
      %s496 = scalar_lea.vmem %s3, %s495
      %p497 = pneg %p112
      %p498 = pneg %p109
      %s499 = sld [smem:[#allocation3 + %s27]]
      %p500 = scmp.lt.s32.totalorder %s499, 6
      %s501 = scalar_select %p500, %s499, 6
      %p502 = scmp.lt.s32.totalorder %s501, 6
      %s503 = scalar_select %p502, %s501, 6
      %s504 = smul.addr %s503, 64
      %s505 = smul.addr %s504, 8
      %s506 = scalar_lea.vmem %s4, %s505
      %p507 = pneg %p144
      %p508 = pneg %p141
      %s509 = sld [smem:[#allocation3 + %s27]]
      %p510 = scmp.lt.s32.totalorder %s509, 6
      %s511 = scalar_select %p510, %s509, 6
      %p512 = scmp.lt.s32.totalorder %s511, 6
      %s513 = scalar_select %p512, %s511, 6
      %s514 = smul.addr %s513, 2
      %s515 = scalar_lea.vmem %s5, %s514
      %p516 = pneg %p176
      %p517 = pneg %p173
      %s518 = sld [smem:[#allocation3 + %s27]]
      %p519 = scmp.lt.s32.totalorder %s518, 6
      %s520 = scalar_select %p519, %s518, 6
      %p521 = scmp.lt.s32.totalorder %s520, 6
      %s522 = scalar_select %p521, %s520, 6
      %s523 = smul.addr %s522, 48
      %s524 = smul.addr %s523, 8
      %s525 = scalar_lea.vmem %s6, %s524
      %p526 = pneg %p208
      %p527 = pneg %p205
      %s528 = sld [smem:[#allocation3 + %s27]]
      %p529 = scmp.lt.s32.totalorder %s528, 6
      %s530 = scalar_select %p529, %s528, 6
      %p531 = scmp.lt.s32.totalorder %s530, 6
      %s532 = scalar_select %p531, %s530, 6
      %s533 = smul.addr %s532, 2
      %s534 = scalar_lea.vmem %s7, %s533
      %p535 = pneg %p240
      %p536 = pneg %p237
      %s537 = sld [smem:[#allocation3 + %s27]]
      %p538 = scmp.lt.s32.totalorder %s537, 6
      %s539 = scalar_select %p538, %s537, 6
      %p540 = scmp.lt.s32.totalorder %s539, 6
      %s541 = scalar_select %p540, %s539, 6
      %s542 = smul.addr %s541, 2
      %s543 = scalar_lea.vmem %s8, %s542
      %p544 = pneg %p272
      %p545 = pneg %p269
      %s546 = sld [smem:[#allocation3 + %s27]]
      %p547 = scmp.lt.s32.totalorder %s546, 6
      %s548 = scalar_select %p547, %s546, 6
      %p549 = scmp.lt.s32.totalorder %s548, 6
      %s550 = scalar_select %p549, %s548, 6
      %s551 = scalar_lea.vmem %s9, %s550
      %p552 = pneg %p304
      %p553 = pneg %p301
      %p554 = pneg %p330
      %p555 = pneg %p327
      %s556 = smul.u32 16, %s27
      %p557 = scmp.lt.s32.totalorder %s556, 159
      %s558 = scalar_select %p557, %s556, 159
      %s559 = smul.addr %s558, 8
      %s560 = scalar_lea.vmem %s10, %s559
      %s561 = smul.u32 16, %s27
      %p562 = scmp.lt.s32.totalorder %s561, 159
      %s563 = scalar_select %p562, %s561, 159
      %s564 = smul.addr %s563, 2
      %s565 = smul.addr %s564, 8
      %s566 = scalar_lea.vmem %s1, %s565
      %s567 = smul.u32 16, %s27
      %s568 = sld [smem:[#allocation3 + %s27]]
      %p569 = scmp.lt.s32.totalorder %s568, 6
      %s570 = scalar_select %p569, %s568, 6
      %p571 = scmp.lt.s32.totalorder %s570, 6
      %s572 = scalar_select %p571, %s570, 6
      %s573 = smul.addr %s572, 64
      %s574 = smul.addr %s573, 8
      %s575 = scalar_lea.vmem %s2, %s574
      %s576 = sld [smem:[#allocation3 + %s27]]
      %p577 = scmp.lt.s32.totalorder %s576, 6
      %s578 = scalar_select %p577, %s576, 6
      %s579 = sld [smem:[#allocation3 + %s27]]
      %p580 = scmp.lt.s32.totalorder %s579, 6
      %s581 = scalar_select %p580, %s579, 6
      %p582 = scmp.lt.s32.totalorder %s581, 6
      %s583 = scalar_select %p582, %s581, 6
      %s584 = smul.addr %s583, 2
      %s585 = scalar_lea.vmem %s3, %s584
      %s586 = sld [smem:[#allocation3 + %s27]]
      %p587 = scmp.lt.s32.totalorder %s586, 6
      %s588 = scalar_select %p587, %s586, 6
      %s589 = sld [smem:[#allocation3 + %s27]]
      %p590 = scmp.lt.s32.totalorder %s589, 6
      %s591 = scalar_select %p590, %s589, 6
      %p592 = scmp.lt.s32.totalorder %s591, 6
      %s593 = scalar_select %p592, %s591, 6
      %s594 = smul.addr %s593, 64
      %s595 = smul.addr %s594, 8
      %s596 = scalar_lea.vmem %s4, %s595
      %s597 = sld [smem:[#allocation3 + %s27]]
      %p598 = scmp.lt.s32.totalorder %s597, 6
      %s599 = scalar_select %p598, %s597, 6
      %s600 = sld [smem:[#allocation3 + %s27]]
      %p601 = scmp.lt.s32.totalorder %s600, 6
      %s602 = scalar_select %p601, %s600, 6
      %p603 = scmp.lt.s32.totalorder %s602, 6
      %s604 = scalar_select %p603, %s602, 6
      %s605 = smul.addr %s604, 2
      %s606 = scalar_lea.vmem %s5, %s605
      %s607 = sld [smem:[#allocation3 + %s27]]
      %p608 = scmp.lt.s32.totalorder %s607, 6
      %s609 = scalar_select %p608, %s607, 6
      %s610 = sld [smem:[#allocation3 + %s27]]
      %p611 = scmp.lt.s32.totalorder %s610, 6
      %s612 = scalar_select %p611, %s610, 6
      %p613 = scmp.lt.s32.totalorder %s612, 6
      %s614 = scalar_select %p613, %s612, 6
      %s615 = smul.addr %s614, 48
      %s616 = smul.addr %s615, 8
      %s617 = scalar_lea.vmem %s6, %s616
      %s618 = sld [smem:[#allocation3 + %s27]]
      %p619 = scmp.lt.s32.totalorder %s618, 6
      %s620 = scalar_select %p619, %s618, 6
      %s621 = sld [smem:[#allocation3 + %s27]]
      %p622 = scmp.lt.s32.totalorder %s621, 6
      %s623 = scalar_select %p622, %s621, 6
      %p624 = scmp.lt.s32.totalorder %s623, 6
      %s625 = scalar_select %p624, %s623, 6
      %s626 = smul.addr %s625, 2
      %s627 = scalar_lea.vmem %s7, %s626
      %s628 = sld [smem:[#allocation3 + %s27]]
      %p629 = scmp.lt.s32.totalorder %s628, 6
      %s630 = scalar_select %p629, %s628, 6
      %s631 = sld [smem:[#allocation3 + %s27]]
      %p632 = scmp.lt.s32.totalorder %s631, 6
      %s633 = scalar_select %p632, %s631, 6
      %p634 = scmp.lt.s32.totalorder %s633, 6
      %s635 = scalar_select %p634, %s633, 6
      %s636 = smul.addr %s635, 2
      %s637 = scalar_lea.vmem %s8, %s636
      %s638 = sld [smem:[#allocation3 + %s27]]
      %p639 = scmp.lt.s32.totalorder %s638, 6
      %s640 = scalar_select %p639, %s638, 6
      %s641 = sld [smem:[#allocation3 + %s27]]
      %p642 = scmp.lt.s32.totalorder %s641, 6
      %s643 = scalar_select %p642, %s641, 6
      %p644 = scmp.lt.s32.totalorder %s643, 6
      %s645 = scalar_select %p644, %s643, 6
      %s646 = scalar_lea.vmem %s9, %s645
      %s647 = sld [smem:[#allocation3 + %s27]]
      %p648 = scmp.lt.s32.totalorder %s647, 6
      %s649 = scalar_select %p648, %s647, 6
      %s650 = smul.u32 16, %s27
      %p651 = scmp.lt.s32.totalorder %s650, 159
      %s652 = scalar_select %p651, %s650, 159
      %s653 = smul.addr %s652, 8
      %s654 = scalar_lea.vmem %s10, %s653
      %s655 = smul.u32 16, %s27
      %s656 = sld [smem:[#allocation3 + %s27]]
      %p657 = scmp.lt.s32.totalorder %s656, 7
      // Predicated region
      $region57: #{tpu_custom_call.1} parent=55 // pred_check
        %p658 = pneg %p657
      $region58: #{tpu_custom_call.1} parent=55 // pred_check_branch
        %660 = sbr.rel (%p658) target = $region60
      $region59: #{tpu_custom_call.1} parent=55 // pred_region
        %v661 = vld [vmem:[%s566] sm:$0xff]
        %v662 = vld [vmem:[%s566 + $0x8] sm:$0xff]
        %v663 = vld [vmem:[%s566 + $0x10] sm:$0xff]
        %v664 = vld [vmem:[%s566 + $0x18] sm:$0xff]
        %v665 = vld [vmem:[%s566 + $0x20] sm:$0xff]
        %v666 = vld [vmem:[%s566 + $0x28] sm:$0xff]
        %v667 = vld [vmem:[%s566 + $0x30] sm:$0xff]
        %v668 = vld [vmem:[%s566 + $0x38] sm:$0xff]
        %v669 = vld [vmem:[%s566 + $0x40] sm:$0xff]
        %v670 = vld [vmem:[%s566 + $0x48] sm:$0xff]
        %v671 = vld [vmem:[%s566 + $0x50] sm:$0xff]
        %v672 = vld [vmem:[%s566 + $0x58] sm:$0xff]
        %v673 = vld [vmem:[%s566 + $0x60] sm:$0xff]
        %v674 = vld [vmem:[%s566 + $0x68] sm:$0xff]
        %v675 = vld [vmem:[%s566 + $0x70] sm:$0xff]
        %v676 = vld [vmem:[%s566 + $0x78] sm:$0xff]
        %v677 = vld [vmem:[%s566 + $0x80] sm:$0xff]
        %v678 = vld [vmem:[%s566 + $0x88] sm:$0xff]
        %v679 = vld [vmem:[%s566 + $0x90] sm:$0xff]
        %v680 = vld [vmem:[%s566 + $0x98] sm:$0xff]
        %v681 = vld [vmem:[%s566 + $0xa0] sm:$0xff]
        %v682 = vld [vmem:[%s566 + $0xa8] sm:$0xff]
        %v683 = vld [vmem:[%s566 + $0xb0] sm:$0xff]
        %v684 = vld [vmem:[%s566 + $0xb8] sm:$0xff]
        %v685 = vld [vmem:[%s566 + $0xc0] sm:$0xff]
        %v686 = vld [vmem:[%s566 + $0xc8] sm:$0xff]
        %v687 = vld [vmem:[%s566 + $0xd0] sm:$0xff]
        %v688 = vld [vmem:[%s566 + $0xd8] sm:$0xff]
        %v689 = vld [vmem:[%s566 + $0xe0] sm:$0xff]
        %v690 = vld [vmem:[%s566 + $0xe8] sm:$0xff]
        %v691 = vld [vmem:[%s566 + $0xf0] sm:$0xff]
        %v692 = vld [vmem:[%s566 + $0xf8] sm:$0xff]
        %v693 = vld [vmem:[%s575] sm:$0xff]
        %v694 = vld [vmem:[%s575 + $0x8] sm:$0xff]
        %v695 = vld [vmem:[%s575 + $0x10] sm:$0xff]
        %v696 = vld [vmem:[%s575 + $0x18] sm:$0xff]
        %v697 = vld [vmem:[%s575 + $0x20] sm:$0xff]
        %v698 = vld [vmem:[%s575 + $0x28] sm:$0xff]
        %v699 = vld [vmem:[%s575 + $0x30] sm:$0xff]
        %v700 = vld [vmem:[%s575 + $0x38] sm:$0xff]
        %v701 = vld [vmem:[%s575 + $0x40] sm:$0xff]
        %v702 = vld [vmem:[%s575 + $0x48] sm:$0xff]
        %v703 = vld [vmem:[%s575 + $0x50] sm:$0xff]
        %v704 = vld [vmem:[%s575 + $0x58] sm:$0xff]
        %v705 = vld [vmem:[%s575 + $0x60] sm:$0xff]
        %v706 = vld [vmem:[%s575 + $0x68] sm:$0xff]
        %v707 = vld [vmem:[%s575 + $0x70] sm:$0xff]
        %v708 = vld [vmem:[%s575 + $0x78] sm:$0xff]
        %v709 = vld [vmem:[%s575 + $0x80] sm:$0xff]
        %v710 = vld [vmem:[%s575 + $0x88] sm:$0xff]
        %v711 = vld [vmem:[%s575 + $0x90] sm:$0xff]
        %v712 = vld [vmem:[%s575 + $0x98] sm:$0xff]
        %v713 = vld [vmem:[%s575 + $0xa0] sm:$0xff]
        %v714 = vld [vmem:[%s575 + $0xa8] sm:$0xff]
        %v715 = vld [vmem:[%s575 + $0xb0] sm:$0xff]
        %v716 = vld [vmem:[%s575 + $0xb8] sm:$0xff]
        %v717 = vld [vmem:[%s575 + $0xc0] sm:$0xff]
        %v718 = vld [vmem:[%s575 + $0xc8] sm:$0xff]
        %v719 = vld [vmem:[%s575 + $0xd0] sm:$0xff]
        %v720 = vld [vmem:[%s575 + $0xd8] sm:$0xff]
        %v721 = vld [vmem:[%s575 + $0xe0] sm:$0xff]
        %v722 = vld [vmem:[%s575 + $0xe8] sm:$0xff]
        %v723 = vld [vmem:[%s575 + $0xf0] sm:$0xff]
        %v724 = vld [vmem:[%s575 + $0xf8] sm:$0xff]
        %v725 = vld [vmem:[%s575 + $0x100] sm:$0xff]
        %v726 = vld [vmem:[%s575 + $0x108] sm:$0xff]
        %v727 = vld [vmem:[%s575 + $0x110] sm:$0xff]
        %v728 = vld [vmem:[%s575 + $0x118] sm:$0xff]
        %v729 = vld [vmem:[%s575 + $0x120] sm:$0xff]
        %v730 = vld [vmem:[%s575 + $0x128] sm:$0xff]
        %v731 = vld [vmem:[%s575 + $0x130] sm:$0xff]
        %v732 = vld [vmem:[%s575 + $0x138] sm:$0xff]
        %v733 = vld [vmem:[%s575 + $0x140] sm:$0xff]
        %v734 = vld [vmem:[%s575 + $0x148] sm:$0xff]
        %v735 = vld [vmem:[%s575 + $0x150] sm:$0xff]
        %v736 = vld [vmem:[%s575 + $0x158] sm:$0xff]
        %v737 = vld [vmem:[%s575 + $0x160] sm:$0xff]
        %v738 = vld [vmem:[%s575 + $0x168] sm:$0xff]
        %v739 = vld [vmem:[%s575 + $0x170] sm:$0xff]
        %v740 = vld [vmem:[%s575 + $0x178] sm:$0xff]
        %v741 = vld [vmem:[%s575 + $0x180] sm:$0xff]
        %v742 = vld [vmem:[%s575 + $0x188] sm:$0xff]
        %v743 = vld [vmem:[%s575 + $0x190] sm:$0xff]
        %v744 = vld [vmem:[%s575 + $0x198] sm:$0xff]
        %v745 = vld [vmem:[%s575 + $0x1a0] sm:$0xff]
        %v746 = vld [vmem:[%s575 + $0x1a8] sm:$0xff]
        %v747 = vld [vmem:[%s575 + $0x1b0] sm:$0xff]
        %v748 = vld [vmem:[%s575 + $0x1b8] sm:$0xff]
        %v749 = vld [vmem:[%s575 + $0x1c0] sm:$0xff]
        %v750 = vld [vmem:[%s575 + $0x1c8] sm:$0xff]
        %v751 = vld [vmem:[%s575 + $0x1d0] sm:$0xff]
        %v752 = vld [vmem:[%s575 + $0x1d8] sm:$0xff]
        %v753 = vld [vmem:[%s575 + $0x1e0] sm:$0xff]
        %v754 = vld [vmem:[%s575 + $0x1e8] sm:$0xff]
        %v755 = vld [vmem:[%s575 + $0x1f0] sm:$0xff]
        %v756 = vld [vmem:[%s575 + $0x1f8] sm:$0xff]
        %v757 = vld [vmem:[%s585] sm:$0x3]
        %v759 = vlaneseq
        %v760 = vshrl.u32 %v759, 7
        %v761 = vsub.s32 0, %v760
        %v762 = vrot.slane %v757, %v761
        %v763 = vlaneseq
        %v764 = vshrl.u32 %v763, 7
        %v765 = vsub.s32 1, %v764
        %v766 = vrot.slane %v757, %v765
        %769 = vmatprep.subr.mxu0 %v724
        %770 = vmatpush1.msra.mxu0 %v723
        %771 = vmatprep.subr.mxu0 %v722
        %772 = vmatpush1.msra.mxu0 %v721
        %773 = vmatprep.subr.mxu0 %v720
        %774 = vmatpush1.msra.mxu0 %v719
        %775 = vmatprep.subr.mxu0 %v718
        %776 = vmatpush1.msra.mxu0 %v717
        %777 = vmatprep.subr.mxu0 %v716
        %778 = vmatpush1.msra.mxu0 %v715
        %779 = vmatprep.subr.mxu0 %v714
        %780 = vmatpush1.msra.mxu0 %v713
        %781 = vmatprep.subr.mxu0 %v712
        %782 = vmatpush1.msra.mxu0 %v711
        %783 = vmatprep.subr.mxu0 %v710
        %784 = vmatpush1.msra.mxu0 %v709
        %785 = vmatprep.subr.mxu0 %v708
        %786 = vmatpush1.msra.mxu0 %v707
        %787 = vmatprep.subr.mxu0 %v706
        %788 = vmatpush1.msra.mxu0 %v705
        %789 = vmatprep.subr.mxu0 %v704
        %790 = vmatpush1.msra.mxu0 %v703
        %791 = vmatprep.subr.mxu0 %v702
        %792 = vmatpush1.msra.mxu0 %v701
        %793 = vmatprep.subr.mxu0 %v700
        %794 = vmatpush1.msra.mxu0 %v699
        %795 = vmatprep.subr.mxu0 %v698
        %796 = vmatpush1.msra.mxu0 %v697
        %797 = vmatprep.subr.mxu0 %v696
        %798 = vmatpush1.msra.mxu0 %v695
        %799 = vmatprep.subr.mxu0 %v694
        %800 = vmatpush1.msra.mxu0 %v693
        %801 = vmatprep.subr.mxu0 %v756
        %802 = vmatpush2.msra.mxu0 %v755
        %803 = vmatprep.subr.mxu0 %v754
        %804 = vmatpush2.msra.mxu0 %v753
        %805 = vmatprep.subr.mxu0 %v752
        %806 = vmatpush2.msra.mxu0 %v751
        %807 = vmatprep.subr.mxu0 %v750
        %808 = vmatpush2.msra.mxu0 %v749
        %809 = vmatprep.subr.mxu0 %v748
        %810 = vmatpush2.msra.mxu0 %v747
        %811 = vmatprep.subr.mxu0 %v746
        %812 = vmatpush2.msra.mxu0 %v745
        %813 = vmatprep.subr.mxu0 %v744
        %814 = vmatpush2.msra.mxu0 %v743
        %815 = vmatprep.subr.mxu0 %v742
        %816 = vmatpush2.msra.mxu0 %v741
        %817 = vmatprep.subr.mxu0 %v740
        %818 = vmatpush2.msra.mxu0 %v739
        %819 = vmatprep.subr.mxu0 %v738
        %820 = vmatpush2.msra.mxu0 %v737
        %821 = vmatprep.subr.mxu0 %v736
        %822 = vmatpush2.msra.mxu0 %v735
        %823 = vmatprep.subr.mxu0 %v734
        %824 = vmatpush2.msra.mxu0 %v733
        %825 = vmatprep.subr.mxu0 %v732
        %826 = vmatpush2.msra.mxu0 %v731
        %827 = vmatprep.subr.mxu0 %v730
        %828 = vmatpush2.msra.mxu0 %v729
        %829 = vmatprep.subr.mxu0 %v728
        %830 = vmatpush2.msra.mxu0 %v727
        %831 = vmatprep.subr.mxu0 %v726
        %832 = vmatpush2.msra.mxu0 %v725
        %833 = vmatprep.mubr.f32.mxu0 %v662
        %834 = vmatmul.mubr.f32.gmra.mxu0 %v661
        %v835 = vpop.f32.mrf.mxu0
        %v836 = vadd.f32 %v762, %v835
        %v837 = vpop.f32.mrf.mxu0
        %v838 = vadd.f32 %v766, %v837
        %839 = vmatprep.mubr.f32.mxu0 %v664
        %840 = vmatmul.mubr.f32.gmra.mxu0 %v663
        %v841 = vpop.f32.mrf.mxu0
        %v842 = vadd.f32 %v762, %v841
        %v843 = vpop.f32.mrf.mxu0
        %v844 = vadd.f32 %v766, %v843
        %845 = vmatprep.mubr.f32.mxu0 %v666
        %846 = vmatmul.mubr.f32.gmra.mxu0 %v665
        %v847 = vpop.f32.mrf.mxu0
        %v848 = vadd.f32 %v762, %v847
        %v849 = vpop.f32.mrf.mxu0
        %v850 = vadd.f32 %v766, %v849
        %851 = vmatprep.mubr.f32.mxu0 %v668
        %852 = vmatmul.mubr.f32.gmra.mxu0 %v667
        %v853 = vpop.f32.mrf.mxu0
        %v854 = vadd.f32 %v762, %v853
        %v855 = vpop.f32.mrf.mxu0
        %v856 = vadd.f32 %v766, %v855
        %857 = vmatprep.mubr.f32.mxu0 %v670
        %858 = vmatmul.mubr.f32.gmra.mxu0 %v669
        %v859 = vpop.f32.mrf.mxu0
        %v860 = vadd.f32 %v762, %v859
        %v861 = vpop.f32.mrf.mxu0
        %v862 = vadd.f32 %v766, %v861
        %863 = vmatprep.mubr.f32.mxu0 %v672
        %864 = vmatmul.mubr.f32.gmra.mxu0 %v671
        %v865 = vpop.f32.mrf.mxu0
        %v866 = vadd.f32 %v762, %v865
        %v867 = vpop.f32.mrf.mxu0
        %v868 = vadd.f32 %v766, %v867
        %869 = vmatprep.mubr.f32.mxu0 %v674
        %870 = vmatmul.mubr.f32.gmra.mxu0 %v673
        %v871 = vpop.f32.mrf.mxu0
        %v872 = vadd.f32 %v762, %v871
        %v873 = vpop.f32.mrf.mxu0
        %v874 = vadd.f32 %v766, %v873
        %875 = vmatprep.mubr.f32.mxu0 %v676
        %876 = vmatmul.mubr.f32.gmra.mxu0 %v675
        %v877 = vpop.f32.mrf.mxu0
        %v878 = vadd.f32 %v762, %v877
        %v879 = vpop.f32.mrf.mxu0
        %v880 = vadd.f32 %v766, %v879
        %881 = vmatprep.mubr.f32.mxu0 %v678
        %882 = vmatmul.mubr.f32.gmra.mxu0 %v677
        %v883 = vpop.f32.mrf.mxu0
        %v884 = vadd.f32 %v762, %v883
        %v885 = vpop.f32.mrf.mxu0
        %v886 = vadd.f32 %v766, %v885
        %887 = vmatprep.mubr.f32.mxu0 %v680
        %888 = vmatmul.mubr.f32.gmra.mxu0 %v679
        %v889 = vpop.f32.mrf.mxu0
        %v890 = vadd.f32 %v762, %v889
        %v891 = vpop.f32.mrf.mxu0
        %v892 = vadd.f32 %v766, %v891
        %893 = vmatprep.mubr.f32.mxu0 %v682
        %894 = vmatmul.mubr.f32.gmra.mxu0 %v681
        %v895 = vpop.f32.mrf.mxu0
        %v896 = vadd.f32 %v762, %v895
        %v897 = vpop.f32.mrf.mxu0
        %v898 = vadd.f32 %v766, %v897
        %899 = vmatprep.mubr.f32.mxu0 %v684
        %900 = vmatmul.mubr.f32.gmra.mxu0 %v683
        %v901 = vpop.f32.mrf.mxu0
        %v902 = vadd.f32 %v762, %v901
        %v903 = vpop.f32.mrf.mxu0
        %v904 = vadd.f32 %v766, %v903
        %905 = vmatprep.mubr.f32.mxu0 %v686
        %906 = vmatmul.mubr.f32.gmra.mxu0 %v685
        %v907 = vpop.f32.mrf.mxu0
        %v908 = vadd.f32 %v762, %v907
        %v909 = vpop.f32.mrf.mxu0
        %v910 = vadd.f32 %v766, %v909
        %911 = vmatprep.mubr.f32.mxu0 %v688
        %912 = vmatmul.mubr.f32.gmra.mxu0 %v687
        %v913 = vpop.f32.mrf.mxu0
        %v914 = vadd.f32 %v762, %v913
        %v915 = vpop.f32.mrf.mxu0
        %v916 = vadd.f32 %v766, %v915
        %917 = vmatprep.mubr.f32.mxu0 %v690
        %918 = vmatmul.mubr.f32.gmra.mxu0 %v689
        %v919 = vpop.f32.mrf.mxu0
        %v920 = vadd.f32 %v762, %v919
        %v921 = vpop.f32.mrf.mxu0
        %v922 = vadd.f32 %v766, %v921
        %923 = vmatprep.mubr.f32.mxu0 %v692
        %924 = vmatmul.mubr.f32.gmra.mxu0 %v691
        %v925 = vpop.f32.mrf.mxu0
        %v926 = vadd.f32 %v762, %v925
        %v927 = vpop.f32.mrf.mxu0
        %v928 = vadd.f32 %v766, %v927
        %929 = vdwg.mxu0
        %vm930 = vcmp.gt.f32.partialorder %v836, 0.0
        %vm931 = vcmp.gt.f32.partialorder %v838, 0.0
        %vm932 = vcmp.gt.f32.partialorder %v842, 0.0
        %vm933 = vcmp.gt.f32.partialorder %v844, 0.0
        %vm934 = vcmp.gt.f32.partialorder %v848, 0.0
        %vm935 = vcmp.gt.f32.partialorder %v850, 0.0
        %vm936 = vcmp.gt.f32.partialorder %v854, 0.0
        %vm937 = vcmp.gt.f32.partialorder %v856, 0.0
        %vm938 = vcmp.gt.f32.partialorder %v860, 0.0
        %vm939 = vcmp.gt.f32.partialorder %v862, 0.0
        %vm940 = vcmp.gt.f32.partialorder %v866, 0.0
        %vm941 = vcmp.gt.f32.partialorder %v868, 0.0
        %vm942 = vcmp.gt.f32.partialorder %v872, 0.0
        %vm943 = vcmp.gt.f32.partialorder %v874, 0.0
        %vm944 = vcmp.gt.f32.partialorder %v878, 0.0
        %vm945 = vcmp.gt.f32.partialorder %v880, 0.0
        %vm946 = vcmp.gt.f32.partialorder %v884, 0.0
        %vm947 = vcmp.gt.f32.partialorder %v886, 0.0
        %vm948 = vcmp.gt.f32.partialorder %v890, 0.0
        %vm949 = vcmp.gt.f32.partialorder %v892, 0.0
        %vm950 = vcmp.gt.f32.partialorder %v896, 0.0
        %vm951 = vcmp.gt.f32.partialorder %v898, 0.0
        %vm952 = vcmp.gt.f32.partialorder %v902, 0.0
        %vm953 = vcmp.gt.f32.partialorder %v904, 0.0
        %vm954 = vcmp.gt.f32.partialorder %v908, 0.0
        %vm955 = vcmp.gt.f32.partialorder %v910, 0.0
        %vm956 = vcmp.gt.f32.partialorder %v914, 0.0
        %vm957 = vcmp.gt.f32.partialorder %v916, 0.0
        %vm958 = vcmp.gt.f32.partialorder %v920, 0.0
        %vm959 = vcmp.gt.f32.partialorder %v922, 0.0
        %vm960 = vcmp.gt.f32.partialorder %v926, 0.0
        %vm961 = vcmp.gt.f32.partialorder %v928, 0.0
        %v962 = vmul.f32 %v836, 10.0
        %v963 = vmul.f32 %v838, 10.0
        %v964 = vmul.f32 %v842, 10.0
        %v965 = vmul.f32 %v844, 10.0
        %v966 = vmul.f32 %v848, 10.0
        %v967 = vmul.f32 %v850, 10.0
        %v968 = vmul.f32 %v854, 10.0
        %v969 = vmul.f32 %v856, 10.0
        %v970 = vmul.f32 %v860, 10.0
        %v971 = vmul.f32 %v862, 10.0
        %v972 = vmul.f32 %v866, 10.0
        %v973 = vmul.f32 %v868, 10.0
        %v974 = vmul.f32 %v872, 10.0
        %v975 = vmul.f32 %v874, 10.0
        %v976 = vmul.f32 %v878, 10.0
        %v977 = vmul.f32 %v880, 10.0
        %v978 = vmul.f32 %v884, 10.0
        %v979 = vmul.f32 %v886, 10.0
        %v980 = vmul.f32 %v890, 10.0
        %v981 = vmul.f32 %v892, 10.0
        %v982 = vmul.f32 %v896, 10.0
        %v983 = vmul.f32 %v898, 10.0
        %v984 = vmul.f32 %v902, 10.0
        %v985 = vmul.f32 %v904, 10.0
        %v986 = vmul.f32 %v908, 10.0
        %v987 = vmul.f32 %v910, 10.0
        %v988 = vmul.f32 %v914, 10.0
        %v989 = vmul.f32 %v916, 10.0
        %v990 = vmul.f32 %v920, 10.0
        %v991 = vmul.f32 %v922, 10.0
        %v992 = vmul.f32 %v926, 10.0
        %v993 = vmul.f32 %v928, 10.0
        %v994 = vmul.f32 %v962, 1.442695
        %v995 = vpow.pop %v994
        %v996 = vmul.f32 %v963, 1.442695
        %v997 = vpow.pop %v996
        %v998 = vmul.f32 %v964, 1.442695
        %v999 = vpow.pop %v998
        %v1000 = vmul.f32 %v965, 1.442695
        %v1001 = vpow.pop %v1000
        %v1002 = vmul.f32 %v966, 1.442695
        %v1003 = vpow.pop %v1002
        %v1004 = vmul.f32 %v967, 1.442695
        %v1005 = vpow.pop %v1004
        %v1006 = vmul.f32 %v968, 1.442695
        %v1007 = vpow.pop %v1006
        %v1008 = vmul.f32 %v969, 1.442695
        %v1009 = vpow.pop %v1008
        %v1010 = vmul.f32 %v970, 1.442695
        %v1011 = vpow.pop %v1010
        %v1012 = vmul.f32 %v971, 1.442695
        %v1013 = vpow.pop %v1012
        %v1014 = vmul.f32 %v972, 1.442695
        %v1015 = vpow.pop %v1014
        %v1016 = vmul.f32 %v973, 1.442695
        %v1017 = vpow.pop %v1016
        %v1018 = vmul.f32 %v974, 1.442695
        %v1019 = vpow.pop %v1018
        %v1020 = vmul.f32 %v975, 1.442695
        %v1021 = vpow.pop %v1020
        %v1022 = vmul.f32 %v976, 1.442695
        %v1023 = vpow.pop %v1022
        %v1024 = vmul.f32 %v977, 1.442695
        %v1025 = vpow.pop %v1024
        %v1026 = vmul.f32 %v978, 1.442695
        %v1027 = vpow.pop %v1026
        %v1028 = vmul.f32 %v979, 1.442695
        %v1029 = vpow.pop %v1028
        %v1030 = vmul.f32 %v980, 1.442695
        %v1031 = vpow.pop %v1030
        %v1032 = vmul.f32 %v981, 1.442695
        %v1033 = vpow.pop %v1032
        %v1034 = vmul.f32 %v982, 1.442695
        %v1035 = vpow.pop %v1034
        %v1036 = vmul.f32 %v983, 1.442695
        %v1037 = vpow.pop %v1036
        %v1038 = vmul.f32 %v984, 1.442695
        %v1039 = vpow.pop %v1038
        %v1040 = vmul.f32 %v985, 1.442695
        %v1041 = vpow.pop %v1040
        %v1042 = vmul.f32 %v986, 1.442695
        %v1043 = vpow.pop %v1042
        %v1044 = vmul.f32 %v987, 1.442695
        %v1045 = vpow.pop %v1044
        %v1046 = vmul.f32 %v988, 1.442695
        %v1047 = vpow.pop %v1046
        %v1048 = vmul.f32 %v989, 1.442695
        %v1049 = vpow.pop %v1048
        %v1050 = vmul.f32 %v990, 1.442695
        %v1051 = vpow.pop %v1050
        %v1052 = vmul.f32 %v991, 1.442695
        %v1053 = vpow.pop %v1052
        %v1054 = vmul.f32 %v992, 1.442695
        %v1055 = vpow.pop %v1054
        %v1056 = vmul.f32 %v993, 1.442695
        %v1057 = vpow.pop %v1056
        %v1058 = vsub.f32 %v995, 1.0
        %v1059 = vsub.f32 %v997, 1.0
        %v1060 = vsub.f32 %v999, 1.0
        %v1061 = vsub.f32 %v1001, 1.0
        %v1062 = vsub.f32 %v1003, 1.0
        %v1063 = vsub.f32 %v1005, 1.0
        %v1064 = vsub.f32 %v1007, 1.0
        %v1065 = vsub.f32 %v1009, 1.0
        %v1066 = vsub.f32 %v1011, 1.0
        %v1067 = vsub.f32 %v1013, 1.0
        %v1068 = vsub.f32 %v1015, 1.0
        %v1069 = vsub.f32 %v1017, 1.0
        %v1070 = vsub.f32 %v1019, 1.0
        %v1071 = vsub.f32 %v1021, 1.0
        %v1072 = vsub.f32 %v1023, 1.0
        %v1073 = vsub.f32 %v1025, 1.0
        %v1074 = vsub.f32 %v1027, 1.0
        %v1075 = vsub.f32 %v1029, 1.0
        %v1076 = vsub.f32 %v1031, 1.0
        %v1077 = vsub.f32 %v1033, 1.0
        %v1078 = vsub.f32 %v1035, 1.0
        %v1079 = vsub.f32 %v1037, 1.0
        %v1080 = vsub.f32 %v1039, 1.0
        %v1081 = vsub.f32 %v1041, 1.0
        %v1082 = vsub.f32 %v1043, 1.0
        %v1083 = vsub.f32 %v1045, 1.0
        %v1084 = vsub.f32 %v1047, 1.0
        %v1085 = vsub.f32 %v1049, 1.0
        %v1086 = vsub.f32 %v1051, 1.0
        %v1087 = vsub.f32 %v1053, 1.0
        %v1088 = vsub.f32 %v1055, 1.0
        %v1089 = vsub.f32 %v1057, 1.0
        %v1090 = vmul.f32 %v1058, 0.1
        %v1091 = vmul.f32 %v1059, 0.1
        %v1092 = vmul.f32 %v1060, 0.1
        %v1093 = vmul.f32 %v1061, 0.1
        %v1094 = vmul.f32 %v1062, 0.1
        %v1095 = vmul.f32 %v1063, 0.1
        %v1096 = vmul.f32 %v1064, 0.1
        %v1097 = vmul.f32 %v1065, 0.1
        %v1098 = vmul.f32 %v1066, 0.1
        %v1099 = vmul.f32 %v1067, 0.1
        %v1100 = vmul.f32 %v1068, 0.1
        %v1101 = vmul.f32 %v1069, 0.1
        %v1102 = vmul.f32 %v1070, 0.1
        %v1103 = vmul.f32 %v1071, 0.1
        %v1104 = vmul.f32 %v1072, 0.1
        %v1105 = vmul.f32 %v1073, 0.1
        %v1106 = vmul.f32 %v1074, 0.1
        %v1107 = vmul.f32 %v1075, 0.1
        %v1108 = vmul.f32 %v1076, 0.1
        %v1109 = vmul.f32 %v1077, 0.1
        %v1110 = vmul.f32 %v1078, 0.1
        %v1111 = vmul.f32 %v1079, 0.1
        %v1112 = vmul.f32 %v1080, 0.1
        %v1113 = vmul.f32 %v1081, 0.1
        %v1114 = vmul.f32 %v1082, 0.1
        %v1115 = vmul.f32 %v1083, 0.1
        %v1116 = vmul.f32 %v1084, 0.1
        %v1117 = vmul.f32 %v1085, 0.1
        %v1118 = vmul.f32 %v1086, 0.1
        %v1119 = vmul.f32 %v1087, 0.1
        %v1120 = vmul.f32 %v1088, 0.1
        %v1121 = vmul.f32 %v1089, 0.1
        %v1122 = vsel %vm930, %v836, %v1090
        %v1123 = vsel %vm931, %v838, %v1091
        %v1124 = vsel %vm932, %v842, %v1092
        %v1125 = vsel %vm933, %v844, %v1093
        %v1126 = vsel %vm934, %v848, %v1094
        %v1127 = vsel %vm935, %v850, %v1095
        %v1128 = vsel %vm936, %v854, %v1096
        %v1129 = vsel %vm937, %v856, %v1097
        %v1130 = vsel %vm938, %v860, %v1098
        %v1131 = vsel %vm939, %v862, %v1099
        %v1132 = vsel %vm940, %v866, %v1100
        %v1133 = vsel %vm941, %v868, %v1101
        %v1134 = vsel %vm942, %v872, %v1102
        %v1135 = vsel %vm943, %v874, %v1103
        %v1136 = vsel %vm944, %v878, %v1104
        %v1137 = vsel %vm945, %v880, %v1105
        %v1138 = vsel %vm946, %v884, %v1106
        %v1139 = vsel %vm947, %v886, %v1107
        %v1140 = vsel %vm948, %v890, %v1108
        %v1141 = vsel %vm949, %v892, %v1109
        %v1142 = vsel %vm950, %v896, %v1110
        %v1143 = vsel %vm951, %v898, %v1111
        %v1144 = vsel %vm952, %v902, %v1112
        %v1145 = vsel %vm953, %v904, %v1113
        %v1146 = vsel %vm954, %v908, %v1114
        %v1147 = vsel %vm955, %v910, %v1115
        %v1148 = vsel %vm956, %v914, %v1116
        %v1149 = vsel %vm957, %v916, %v1117
        %v1150 = vsel %vm958, %v920, %v1118
        %v1151 = vsel %vm959, %v922, %v1119
        %v1152 = vsel %vm960, %v926, %v1120
        %v1153 = vsel %vm961, %v928, %v1121
        %v1154 = vld [vmem:[%s596] sm:$0xff]
        %v1155 = vld [vmem:[%s596 + $0x8] sm:$0xff]
        %v1156 = vld [vmem:[%s596 + $0x10] sm:$0xff]
        %v1157 = vld [vmem:[%s596 + $0x18] sm:$0xff]
        %v1158 = vld [vmem:[%s596 + $0x20] sm:$0xff]
        %v1159 = vld [vmem:[%s596 + $0x28] sm:$0xff]
        %v1160 = vld [vmem:[%s596 + $0x30] sm:$0xff]
        %v1161 = vld [vmem:[%s596 + $0x38] sm:$0xff]
        %v1162 = vld [vmem:[%s596 + $0x40] sm:$0xff]
        %v1163 = vld [vmem:[%s596 + $0x48] sm:$0xff]
        %v1164 = vld [vmem:[%s596 + $0x50] sm:$0xff]
        %v1165 = vld [vmem:[%s596 + $0x58] sm:$0xff]
        %v1166 = vld [vmem:[%s596 + $0x60] sm:$0xff]
        %v1167 = vld [vmem:[%s596 + $0x68] sm:$0xff]
        %v1168 = vld [vmem:[%s596 + $0x70] sm:$0xff]
        %v1169 = vld [vmem:[%s596 + $0x78] sm:$0xff]
        %v1170 = vld [vmem:[%s596 + $0x80] sm:$0xff]
        %v1171 = vld [vmem:[%s596 + $0x88] sm:$0xff]
        %v1172 = vld [vmem:[%s596 + $0x90] sm:$0xff]
        %v1173 = vld [vmem:[%s596 + $0x98] sm:$0xff]
        %v1174 = vld [vmem:[%s596 + $0xa0] sm:$0xff]
        %v1175 = vld [vmem:[%s596 + $0xa8] sm:$0xff]
        %v1176 = vld [vmem:[%s596 + $0xb0] sm:$0xff]
        %v1177 = vld [vmem:[%s596 + $0xb8] sm:$0xff]
        %v1178 = vld [vmem:[%s596 + $0xc0] sm:$0xff]
        %v1179 = vld [vmem:[%s596 + $0xc8] sm:$0xff]
        %v1180 = vld [vmem:[%s596 + $0xd0] sm:$0xff]
        %v1181 = vld [vmem:[%s596 + $0xd8] sm:$0xff]
        %v1182 = vld [vmem:[%s596 + $0xe0] sm:$0xff]
        %v1183 = vld [vmem:[%s596 + $0xe8] sm:$0xff]
        %v1184 = vld [vmem:[%s596 + $0xf0] sm:$0xff]
        %v1185 = vld [vmem:[%s596 + $0xf8] sm:$0xff]
        %v1186 = vld [vmem:[%s596 + $0x100] sm:$0xff]
        %v1187 = vld [vmem:[%s596 + $0x108] sm:$0xff]
        %v1188 = vld [vmem:[%s596 + $0x110] sm:$0xff]
        %v1189 = vld [vmem:[%s596 + $0x118] sm:$0xff]
        %v1190 = vld [vmem:[%s596 + $0x120] sm:$0xff]
        %v1191 = vld [vmem:[%s596 + $0x128] sm:$0xff]
        %v1192 = vld [vmem:[%s596 + $0x130] sm:$0xff]
        %v1193 = vld [vmem:[%s596 + $0x138] sm:$0xff]
        %v1194 = vld [vmem:[%s596 + $0x140] sm:$0xff]
        %v1195 = vld [vmem:[%s596 + $0x148] sm:$0xff]
        %v1196 = vld [vmem:[%s596 + $0x150] sm:$0xff]
        %v1197 = vld [vmem:[%s596 + $0x158] sm:$0xff]
        %v1198 = vld [vmem:[%s596 + $0x160] sm:$0xff]
        %v1199 = vld [vmem:[%s596 + $0x168] sm:$0xff]
        %v1200 = vld [vmem:[%s596 + $0x170] sm:$0xff]
        %v1201 = vld [vmem:[%s596 + $0x178] sm:$0xff]
        %v1202 = vld [vmem:[%s596 + $0x180] sm:$0xff]
        %v1203 = vld [vmem:[%s596 + $0x188] sm:$0xff]
        %v1204 = vld [vmem:[%s596 + $0x190] sm:$0xff]
        %v1205 = vld [vmem:[%s596 + $0x198] sm:$0xff]
        %v1206 = vld [vmem:[%s596 + $0x1a0] sm:$0xff]
        %v1207 = vld [vmem:[%s596 + $0x1a8] sm:$0xff]
        %v1208 = vld [vmem:[%s596 + $0x1b0] sm:$0xff]
        %v1209 = vld [vmem:[%s596 + $0x1b8] sm:$0xff]
        %v1210 = vld [vmem:[%s596 + $0x1c0] sm:$0xff]
        %v1211 = vld [vmem:[%s596 + $0x1c8] sm:$0xff]
        %v1212 = vld [vmem:[%s596 + $0x1d0] sm:$0xff]
        %v1213 = vld [vmem:[%s596 + $0x1d8] sm:$0xff]
        %v1214 = vld [vmem:[%s596 + $0x1e0] sm:$0xff]
        %v1215 = vld [vmem:[%s596 + $0x1e8] sm:$0xff]
        %v1216 = vld [vmem:[%s596 + $0x1f0] sm:$0xff]
        %v1217 = vld [vmem:[%s596 + $0x1f8] sm:$0xff]
        %v1218 = vld [vmem:[%s606] sm:$0x3]
        %v1220 = vlaneseq
        %v1221 = vshrl.u32 %v1220, 7
        %v1222 = vsub.s32 0, %v1221
        %v1223 = vrot.slane %v1218, %v1222
        %v1224 = vlaneseq
        %v1225 = vshrl.u32 %v1224, 7
        %v1226 = vsub.s32 1, %v1225
        %v1227 = vrot.slane %v1218, %v1226
        %1230 = vmatprep.subr.mxu0 %v1185
        %1231 = vmatpush1.msra.mxu0 %v1184
        %1232 = vmatprep.subr.mxu0 %v1183
        %1233 = vmatpush1.msra.mxu0 %v1182
        %1234 = vmatprep.subr.mxu0 %v1181
        %1235 = vmatpush1.msra.mxu0 %v1180
        %1236 = vmatprep.subr.mxu0 %v1179
        %1237 = vmatpush1.msra.mxu0 %v1178
        %1238 = vmatprep.subr.mxu0 %v1177
        %1239 = vmatpush1.msra.mxu0 %v1176
        %1240 = vmatprep.subr.mxu0 %v1175
        %1241 = vmatpush1.msra.mxu0 %v1174
        %1242 = vmatprep.subr.mxu0 %v1173
        %1243 = vmatpush1.msra.mxu0 %v1172
        %1244 = vmatprep.subr.mxu0 %v1171
        %1245 = vmatpush1.msra.mxu0 %v1170
        %1246 = vmatprep.subr.mxu0 %v1169
        %1247 = vmatpush1.msra.mxu0 %v1168
        %1248 = vmatprep.subr.mxu0 %v1167
        %1249 = vmatpush1.msra.mxu0 %v1166
        %1250 = vmatprep.subr.mxu0 %v1165
        %1251 = vmatpush1.msra.mxu0 %v1164
        %1252 = vmatprep.subr.mxu0 %v1163
        %1253 = vmatpush1.msra.mxu0 %v1162
        %1254 = vmatprep.subr.mxu0 %v1161
        %1255 = vmatpush1.msra.mxu0 %v1160
        %1256 = vmatprep.subr.mxu0 %v1159
        %1257 = vmatpush1.msra.mxu0 %v1158
        %1258 = vmatprep.subr.mxu0 %v1157
        %1259 = vmatpush1.msra.mxu0 %v1156
        %1260 = vmatprep.subr.mxu0 %v1155
        %1261 = vmatpush1.msra.mxu0 %v1154
        %1262 = vmatprep.subr.mxu0 %v1217
        %1263 = vmatpush2.msra.mxu0 %v1216
        %1264 = vmatprep.subr.mxu0 %v1215
        %1265 = vmatpush2.msra.mxu0 %v1214
        %1266 = vmatprep.subr.mxu0 %v1213
        %1267 = vmatpush2.msra.mxu0 %v1212
        %1268 = vmatprep.subr.mxu0 %v1211
        %1269 = vmatpush2.msra.mxu0 %v1210
        %1270 = vmatprep.subr.mxu0 %v1209
        %1271 = vmatpush2.msra.mxu0 %v1208
        %1272 = vmatprep.subr.mxu0 %v1207
        %1273 = vmatpush2.msra.mxu0 %v1206
        %1274 = vmatprep.subr.mxu0 %v1205
        %1275 = vmatpush2.msra.mxu0 %v1204
        %1276 = vmatprep.subr.mxu0 %v1203
        %1277 = vmatpush2.msra.mxu0 %v1202
        %1278 = vmatprep.subr.mxu0 %v1201
        %1279 = vmatpush2.msra.mxu0 %v1200
        %1280 = vmatprep.subr.mxu0 %v1199
        %1281 = vmatpush2.msra.mxu0 %v1198
        %1282 = vmatprep.subr.mxu0 %v1197
        %1283 = vmatpush2.msra.mxu0 %v1196
        %1284 = vmatprep.subr.mxu0 %v1195
        %1285 = vmatpush2.msra.mxu0 %v1194
        %1286 = vmatprep.subr.mxu0 %v1193
        %1287 = vmatpush2.msra.mxu0 %v1192
        %1288 = vmatprep.subr.mxu0 %v1191
        %1289 = vmatpush2.msra.mxu0 %v1190
        %1290 = vmatprep.subr.mxu0 %v1189
        %1291 = vmatpush2.msra.mxu0 %v1188
        %1292 = vmatprep.subr.mxu0 %v1187
        %1293 = vmatpush2.msra.mxu0 %v1186
        %1294 = vmatprep.mubr.f32.mxu0 %v1123
        %1295 = vmatmul.mubr.f32.gmra.mxu0 %v1122
        %v1296 = vpop.f32.mrf.mxu0
        %v1297 = vadd.f32 %v1223, %v1296
        %v1298 = vpop.f32.mrf.mxu0
        %v1299 = vadd.f32 %v1227, %v1298
        %1300 = vmatprep.mubr.f32.mxu0 %v1125
        %1301 = vmatmul.mubr.f32.gmra.mxu0 %v1124
        %v1302 = vpop.f32.mrf.mxu0
        %v1303 = vadd.f32 %v1223, %v1302
        %v1304 = vpop.f32.mrf.mxu0
        %v1305 = vadd.f32 %v1227, %v1304
        %1306 = vmatprep.mubr.f32.mxu0 %v1127
        %1307 = vmatmul.mubr.f32.gmra.mxu0 %v1126
        %v1308 = vpop.f32.mrf.mxu0
        %v1309 = vadd.f32 %v1223, %v1308
        %v1310 = vpop.f32.mrf.mxu0
        %v1311 = vadd.f32 %v1227, %v1310
        %1312 = vmatprep.mubr.f32.mxu0 %v1129
        %1313 = vmatmul.mubr.f32.gmra.mxu0 %v1128
        %v1314 = vpop.f32.mrf.mxu0
        %v1315 = vadd.f32 %v1223, %v1314
        %v1316 = vpop.f32.mrf.mxu0
        %v1317 = vadd.f32 %v1227, %v1316
        %1318 = vmatprep.mubr.f32.mxu0 %v1131
        %1319 = vmatmul.mubr.f32.gmra.mxu0 %v1130
        %v1320 = vpop.f32.mrf.mxu0
        %v1321 = vadd.f32 %v1223, %v1320
        %v1322 = vpop.f32.mrf.mxu0
        %v1323 = vadd.f32 %v1227, %v1322
        %1324 = vmatprep.mubr.f32.mxu0 %v1133
        %1325 = vmatmul.mubr.f32.gmra.mxu0 %v1132
        %v1326 = vpop.f32.mrf.mxu0
        %v1327 = vadd.f32 %v1223, %v1326
        %v1328 = vpop.f32.mrf.mxu0
        %v1329 = vadd.f32 %v1227, %v1328
        %1330 = vmatprep.mubr.f32.mxu0 %v1135
        %1331 = vmatmul.mubr.f32.gmra.mxu0 %v1134
        %v1332 = vpop.f32.mrf.mxu0
        %v1333 = vadd.f32 %v1223, %v1332
        %v1334 = vpop.f32.mrf.mxu0
        %v1335 = vadd.f32 %v1227, %v1334
        %1336 = vmatprep.mubr.f32.mxu0 %v1137
        %1337 = vmatmul.mubr.f32.gmra.mxu0 %v1136
        %v1338 = vpop.f32.mrf.mxu0
        %v1339 = vadd.f32 %v1223, %v1338
        %v1340 = vpop.f32.mrf.mxu0
        %v1341 = vadd.f32 %v1227, %v1340
        %1342 = vmatprep.mubr.f32.mxu0 %v1139
        %1343 = vmatmul.mubr.f32.gmra.mxu0 %v1138
        %v1344 = vpop.f32.mrf.mxu0
        %v1345 = vadd.f32 %v1223, %v1344
        %v1346 = vpop.f32.mrf.mxu0
        %v1347 = vadd.f32 %v1227, %v1346
        %1348 = vmatprep.mubr.f32.mxu0 %v1141
        %1349 = vmatmul.mubr.f32.gmra.mxu0 %v1140
        %v1350 = vpop.f32.mrf.mxu0
        %v1351 = vadd.f32 %v1223, %v1350
        %v1352 = vpop.f32.mrf.mxu0
        %v1353 = vadd.f32 %v1227, %v1352
        %1354 = vmatprep.mubr.f32.mxu0 %v1143
        %1355 = vmatmul.mubr.f32.gmra.mxu0 %v1142
        %v1356 = vpop.f32.mrf.mxu0
        %v1357 = vadd.f32 %v1223, %v1356
        %v1358 = vpop.f32.mrf.mxu0
        %v1359 = vadd.f32 %v1227, %v1358
        %1360 = vmatprep.mubr.f32.mxu0 %v1145
        %1361 = vmatmul.mubr.f32.gmra.mxu0 %v1144
        %v1362 = vpop.f32.mrf.mxu0
        %v1363 = vadd.f32 %v1223, %v1362
        %v1364 = vpop.f32.mrf.mxu0
        %v1365 = vadd.f32 %v1227, %v1364
        %1366 = vmatprep.mubr.f32.mxu0 %v1147
        %1367 = vmatmul.mubr.f32.gmra.mxu0 %v1146
        %v1368 = vpop.f32.mrf.mxu0
        %v1369 = vadd.f32 %v1223, %v1368
        %v1370 = vpop.f32.mrf.mxu0
        %v1371 = vadd.f32 %v1227, %v1370
        %1372 = vmatprep.mubr.f32.mxu0 %v1149
        %1373 = vmatmul.mubr.f32.gmra.mxu0 %v1148
        %v1374 = vpop.f32.mrf.mxu0
        %v1375 = vadd.f32 %v1223, %v1374
        %v1376 = vpop.f32.mrf.mxu0
        %v1377 = vadd.f32 %v1227, %v1376
        %1378 = vmatprep.mubr.f32.mxu0 %v1151
        %1379 = vmatmul.mubr.f32.gmra.mxu0 %v1150
        %v1380 = vpop.f32.mrf.mxu0
        %v1381 = vadd.f32 %v1223, %v1380
        %v1382 = vpop.f32.mrf.mxu0
        %v1383 = vadd.f32 %v1227, %v1382
        %1384 = vmatprep.mubr.f32.mxu0 %v1153
        %1385 = vmatmul.mubr.f32.gmra.mxu0 %v1152
        %v1386 = vpop.f32.mrf.mxu0
        %v1387 = vadd.f32 %v1223, %v1386
        %v1388 = vpop.f32.mrf.mxu0
        %v1389 = vadd.f32 %v1227, %v1388
        %1390 = vdwg.mxu0
        %vm1391 = vcmp.gt.f32.partialorder %v1297, 0.0
        %vm1392 = vcmp.gt.f32.partialorder %v1299, 0.0
        %vm1393 = vcmp.gt.f32.partialorder %v1303, 0.0
        %vm1394 = vcmp.gt.f32.partialorder %v1305, 0.0
        %vm1395 = vcmp.gt.f32.partialorder %v1309, 0.0
        %vm1396 = vcmp.gt.f32.partialorder %v1311, 0.0
        %vm1397 = vcmp.gt.f32.partialorder %v1315, 0.0
        %vm1398 = vcmp.gt.f32.partialorder %v1317, 0.0
        %vm1399 = vcmp.gt.f32.partialorder %v1321, 0.0
        %vm1400 = vcmp.gt.f32.partialorder %v1323, 0.0
        %vm1401 = vcmp.gt.f32.partialorder %v1327, 0.0
        %vm1402 = vcmp.gt.f32.partialorder %v1329, 0.0
        %vm1403 = vcmp.gt.f32.partialorder %v1333, 0.0
        %vm1404 = vcmp.gt.f32.partialorder %v1335, 0.0
        %vm1405 = vcmp.gt.f32.partialorder %v1339, 0.0
        %vm1406 = vcmp.gt.f32.partialorder %v1341, 0.0
        %vm1407 = vcmp.gt.f32.partialorder %v1345, 0.0
        %vm1408 = vcmp.gt.f32.partialorder %v1347, 0.0
        %vm1409 = vcmp.gt.f32.partialorder %v1351, 0.0
        %vm1410 = vcmp.gt.f32.partialorder %v1353, 0.0
        %vm1411 = vcmp.gt.f32.partialorder %v1357, 0.0
        %vm1412 = vcmp.gt.f32.partialorder %v1359, 0.0
        %vm1413 = vcmp.gt.f32.partialorder %v1363, 0.0
        %vm1414 = vcmp.gt.f32.partialorder %v1365, 0.0
        %vm1415 = vcmp.gt.f32.partialorder %v1369, 0.0
        %vm1416 = vcmp.gt.f32.partialorder %v1371, 0.0
        %vm1417 = vcmp.gt.f32.partialorder %v1375, 0.0
        %vm1418 = vcmp.gt.f32.partialorder %v1377, 0.0
        %vm1419 = vcmp.gt.f32.partialorder %v1381, 0.0
        %vm1420 = vcmp.gt.f32.partialorder %v1383, 0.0
        %vm1421 = vcmp.gt.f32.partialorder %v1387, 0.0
        %vm1422 = vcmp.gt.f32.partialorder %v1389, 0.0
        %v1423 = vmul.f32 %v1297, 10.0
        %v1424 = vmul.f32 %v1299, 10.0
        %v1425 = vmul.f32 %v1303, 10.0
        %v1426 = vmul.f32 %v1305, 10.0
        %v1427 = vmul.f32 %v1309, 10.0
        %v1428 = vmul.f32 %v1311, 10.0
        %v1429 = vmul.f32 %v1315, 10.0
        %v1430 = vmul.f32 %v1317, 10.0
        %v1431 = vmul.f32 %v1321, 10.0
        %v1432 = vmul.f32 %v1323, 10.0
        %v1433 = vmul.f32 %v1327, 10.0
        %v1434 = vmul.f32 %v1329, 10.0
        %v1435 = vmul.f32 %v1333, 10.0
        %v1436 = vmul.f32 %v1335, 10.0
        %v1437 = vmul.f32 %v1339, 10.0
        %v1438 = vmul.f32 %v1341, 10.0
        %v1439 = vmul.f32 %v1345, 10.0
        %v1440 = vmul.f32 %v1347, 10.0
        %v1441 = vmul.f32 %v1351, 10.0
        %v1442 = vmul.f32 %v1353, 10.0
        %v1443 = vmul.f32 %v1357, 10.0
        %v1444 = vmul.f32 %v1359, 10.0
        %v1445 = vmul.f32 %v1363, 10.0
        %v1446 = vmul.f32 %v1365, 10.0
        %v1447 = vmul.f32 %v1369, 10.0
        %v1448 = vmul.f32 %v1371, 10.0
        %v1449 = vmul.f32 %v1375, 10.0
        %v1450 = vmul.f32 %v1377, 10.0
        %v1451 = vmul.f32 %v1381, 10.0
        %v1452 = vmul.f32 %v1383, 10.0
        %v1453 = vmul.f32 %v1387, 10.0
        %v1454 = vmul.f32 %v1389, 10.0
        %v1455 = vmul.f32 %v1423, 1.442695
        %v1456 = vpow.pop %v1455
        %v1457 = vmul.f32 %v1424, 1.442695
        %v1458 = vpow.pop %v1457
        %v1459 = vmul.f32 %v1425, 1.442695
        %v1460 = vpow.pop %v1459
        %v1461 = vmul.f32 %v1426, 1.442695
        %v1462 = vpow.pop %v1461
        %v1463 = vmul.f32 %v1427, 1.442695
        %v1464 = vpow.pop %v1463
        %v1465 = vmul.f32 %v1428, 1.442695
        %v1466 = vpow.pop %v1465
        %v1467 = vmul.f32 %v1429, 1.442695
        %v1468 = vpow.pop %v1467
        %v1469 = vmul.f32 %v1430, 1.442695
        %v1470 = vpow.pop %v1469
        %v1471 = vmul.f32 %v1431, 1.442695
        %v1472 = vpow.pop %v1471
        %v1473 = vmul.f32 %v1432, 1.442695
        %v1474 = vpow.pop %v1473
        %v1475 = vmul.f32 %v1433, 1.442695
        %v1476 = vpow.pop %v1475
        %v1477 = vmul.f32 %v1434, 1.442695
        %v1478 = vpow.pop %v1477
        %v1479 = vmul.f32 %v1435, 1.442695
        %v1480 = vpow.pop %v1479
        %v1481 = vmul.f32 %v1436, 1.442695
        %v1482 = vpow.pop %v1481
        %v1483 = vmul.f32 %v1437, 1.442695
        %v1484 = vpow.pop %v1483
        %v1485 = vmul.f32 %v1438, 1.442695
        %v1486 = vpow.pop %v1485
        %v1487 = vmul.f32 %v1439, 1.442695
        %v1488 = vpow.pop %v1487
        %v1489 = vmul.f32 %v1440, 1.442695
        %v1490 = vpow.pop %v1489
        %v1491 = vmul.f32 %v1441, 1.442695
        %v1492 = vpow.pop %v1491
        %v1493 = vmul.f32 %v1442, 1.442695
        %v1494 = vpow.pop %v1493
        %v1495 = vmul.f32 %v1443, 1.442695
        %v1496 = vpow.pop %v1495
        %v1497 = vmul.f32 %v1444, 1.442695
        %v1498 = vpow.pop %v1497
        %v1499 = vmul.f32 %v1445, 1.442695
        %v1500 = vpow.pop %v1499
        %v1501 = vmul.f32 %v1446, 1.442695
        %v1502 = vpow.pop %v1501
        %v1503 = vmul.f32 %v1447, 1.442695
        %v1504 = vpow.pop %v1503
        %v1505 = vmul.f32 %v1448, 1.442695
        %v1506 = vpow.pop %v1505
        %v1507 = vmul.f32 %v1449, 1.442695
        %v1508 = vpow.pop %v1507
        %v1509 = vmul.f32 %v1450, 1.442695
        %v1510 = vpow.pop %v1509
        %v1511 = vmul.f32 %v1451, 1.442695
        %v1512 = vpow.pop %v1511
        %v1513 = vmul.f32 %v1452, 1.442695
        %v1514 = vpow.pop %v1513
        %v1515 = vmul.f32 %v1453, 1.442695
        %v1516 = vpow.pop %v1515
        %v1517 = vmul.f32 %v1454, 1.442695
        %v1518 = vpow.pop %v1517
        %v1519 = vsub.f32 %v1456, 1.0
        %v1520 = vsub.f32 %v1458, 1.0
        %v1521 = vsub.f32 %v1460, 1.0
        %v1522 = vsub.f32 %v1462, 1.0
        %v1523 = vsub.f32 %v1464, 1.0
        %v1524 = vsub.f32 %v1466, 1.0
        %v1525 = vsub.f32 %v1468, 1.0
        %v1526 = vsub.f32 %v1470, 1.0
        %v1527 = vsub.f32 %v1472, 1.0
        %v1528 = vsub.f32 %v1474, 1.0
        %v1529 = vsub.f32 %v1476, 1.0
        %v1530 = vsub.f32 %v1478, 1.0
        %v1531 = vsub.f32 %v1480, 1.0
        %v1532 = vsub.f32 %v1482, 1.0
        %v1533 = vsub.f32 %v1484, 1.0
        %v1534 = vsub.f32 %v1486, 1.0
        %v1535 = vsub.f32 %v1488, 1.0
        %v1536 = vsub.f32 %v1490, 1.0
        %v1537 = vsub.f32 %v1492, 1.0
        %v1538 = vsub.f32 %v1494, 1.0
        %v1539 = vsub.f32 %v1496, 1.0
        %v1540 = vsub.f32 %v1498, 1.0
        %v1541 = vsub.f32 %v1500, 1.0
        %v1542 = vsub.f32 %v1502, 1.0
        %v1543 = vsub.f32 %v1504, 1.0
        %v1544 = vsub.f32 %v1506, 1.0
        %v1545 = vsub.f32 %v1508, 1.0
        %v1546 = vsub.f32 %v1510, 1.0
        %v1547 = vsub.f32 %v1512, 1.0
        %v1548 = vsub.f32 %v1514, 1.0
        %v1549 = vsub.f32 %v1516, 1.0
        %v1550 = vsub.f32 %v1518, 1.0
        %v1551 = vmul.f32 %v1519, 0.1
        %v1552 = vmul.f32 %v1520, 0.1
        %v1553 = vmul.f32 %v1521, 0.1
        %v1554 = vmul.f32 %v1522, 0.1
        %v1555 = vmul.f32 %v1523, 0.1
        %v1556 = vmul.f32 %v1524, 0.1
        %v1557 = vmul.f32 %v1525, 0.1
        %v1558 = vmul.f32 %v1526, 0.1
        %v1559 = vmul.f32 %v1527, 0.1
        %v1560 = vmul.f32 %v1528, 0.1
        %v1561 = vmul.f32 %v1529, 0.1
        %v1562 = vmul.f32 %v1530, 0.1
        %v1563 = vmul.f32 %v1531, 0.1
        %v1564 = vmul.f32 %v1532, 0.1
        %v1565 = vmul.f32 %v1533, 0.1
        %v1566 = vmul.f32 %v1534, 0.1
        %v1567 = vmul.f32 %v1535, 0.1
        %v1568 = vmul.f32 %v1536, 0.1
        %v1569 = vmul.f32 %v1537, 0.1
        %v1570 = vmul.f32 %v1538, 0.1
        %v1571 = vmul.f32 %v1539, 0.1
        %v1572 = vmul.f32 %v1540, 0.1
        %v1573 = vmul.f32 %v1541, 0.1
        %v1574 = vmul.f32 %v1542, 0.1
        %v1575 = vmul.f32 %v1543, 0.1
        %v1576 = vmul.f32 %v1544, 0.1
        %v1577 = vmul.f32 %v1545, 0.1
        %v1578 = vmul.f32 %v1546, 0.1
        %v1579 = vmul.f32 %v1547, 0.1
        %v1580 = vmul.f32 %v1548, 0.1
        %v1581 = vmul.f32 %v1549, 0.1
        %v1582 = vmul.f32 %v1550, 0.1
        %v1583 = vsel %vm1391, %v1297, %v1551
        %v1584 = vsel %vm1392, %v1299, %v1552
        %v1585 = vsel %vm1393, %v1303, %v1553
        %v1586 = vsel %vm1394, %v1305, %v1554
        %v1587 = vsel %vm1395, %v1309, %v1555
        %v1588 = vsel %vm1396, %v1311, %v1556
        %v1589 = vsel %vm1397, %v1315, %v1557
        %v1590 = vsel %vm1398, %v1317, %v1558
        %v1591 = vsel %vm1399, %v1321, %v1559
        %v1592 = vsel %vm1400, %v1323, %v1560
        %v1593 = vsel %vm1401, %v1327, %v1561
        %v1594 = vsel %vm1402, %v1329, %v1562
        %v1595 = vsel %vm1403, %v1333, %v1563
        %v1596 = vsel %vm1404, %v1335, %v1564
        %v1597 = vsel %vm1405, %v1339, %v1565
        %v1598 = vsel %vm1406, %v1341, %v1566
        %v1599 = vsel %vm1407, %v1345, %v1567
        %v1600 = vsel %vm1408, %v1347, %v1568
        %v1601 = vsel %vm1409, %v1351, %v1569
        %v1602 = vsel %vm1410, %v1353, %v1570
        %v1603 = vsel %vm1411, %v1357, %v1571
        %v1604 = vsel %vm1412, %v1359, %v1572
        %v1605 = vsel %vm1413, %v1363, %v1573
        %v1606 = vsel %vm1414, %v1365, %v1574
        %v1607 = vsel %vm1415, %v1369, %v1575
        %v1608 = vsel %vm1416, %v1371, %v1576
        %v1609 = vsel %vm1417, %v1375, %v1577
        %v1610 = vsel %vm1418, %v1377, %v1578
        %v1611 = vsel %vm1419, %v1381, %v1579
        %v1612 = vsel %vm1420, %v1383, %v1580
        %v1613 = vsel %vm1421, %v1387, %v1581
        %v1614 = vsel %vm1422, %v1389, %v1582
        %v1615 = vld [vmem:[%s617] sm:$0xff]
        %v1616 = vld [vmem:[%s617 + $0x8] sm:$0xff]
        %v1617 = vld [vmem:[%s617 + $0x10] sm:$0xff]
        %v1618 = vld [vmem:[%s617 + $0x18] sm:$0xff]
        %v1619 = vld [vmem:[%s617 + $0x20] sm:$0xff]
        %v1620 = vld [vmem:[%s617 + $0x28] sm:$0xff]
        %v1621 = vld [vmem:[%s617 + $0x30] sm:$0xff]
        %v1622 = vld [vmem:[%s617 + $0x38] sm:$0xff]
        %v1623 = vld [vmem:[%s617 + $0x40] sm:$0xff]
        %v1624 = vld [vmem:[%s617 + $0x48] sm:$0xff]
        %v1625 = vld [vmem:[%s617 + $0x50] sm:$0xff]
        %v1626 = vld [vmem:[%s617 + $0x58] sm:$0xff]
        %v1627 = vld [vmem:[%s617 + $0x60] sm:$0xff]
        %v1628 = vld [vmem:[%s617 + $0x68] sm:$0xff]
        %v1629 = vld [vmem:[%s617 + $0x70] sm:$0xff]
        %v1630 = vld [vmem:[%s617 + $0x78] sm:$0xff]
        %v1631 = vld [vmem:[%s617 + $0x80] sm:$0xff]
        %v1632 = vld [vmem:[%s617 + $0x88] sm:$0xff]
        %v1633 = vld [vmem:[%s617 + $0x90] sm:$0xff]
        %v1634 = vld [vmem:[%s617 + $0x98] sm:$0xff]
        %v1635 = vld [vmem:[%s617 + $0xa0] sm:$0xff]
        %v1636 = vld [vmem:[%s617 + $0xa8] sm:$0xff]
        %v1637 = vld [vmem:[%s617 + $0xb0] sm:$0xff]
        %v1638 = vld [vmem:[%s617 + $0xb8] sm:$0xff]
        %v1639 = vld [vmem:[%s617 + $0xc0] sm:$0xff]
        %v1640 = vld [vmem:[%s617 + $0xc8] sm:$0xff]
        %v1641 = vld [vmem:[%s617 + $0xd0] sm:$0xff]
        %v1642 = vld [vmem:[%s617 + $0xd8] sm:$0xff]
        %v1643 = vld [vmem:[%s617 + $0xe0] sm:$0xff]
        %v1644 = vld [vmem:[%s617 + $0xe8] sm:$0xff]
        %v1645 = vld [vmem:[%s617 + $0xf0] sm:$0xff]
        %v1646 = vld [vmem:[%s617 + $0xf8] sm:$0xff]
        %v1647 = vld [vmem:[%s617 + $0x100] sm:$0xff]
        %v1648 = vld [vmem:[%s617 + $0x108] sm:$0xff]
        %v1649 = vld [vmem:[%s617 + $0x110] sm:$0xff]
        %v1650 = vld [vmem:[%s617 + $0x118] sm:$0xff]
        %v1651 = vld [vmem:[%s617 + $0x120] sm:$0xff]
        %v1652 = vld [vmem:[%s617 + $0x128] sm:$0xff]
        %v1653 = vld [vmem:[%s617 + $0x130] sm:$0xff]
        %v1654 = vld [vmem:[%s617 + $0x138] sm:$0xff]
        %v1655 = vld [vmem:[%s617 + $0x140] sm:$0xff]
        %v1656 = vld [vmem:[%s617 + $0x148] sm:$0xff]
        %v1657 = vld [vmem:[%s617 + $0x150] sm:$0xff]
        %v1658 = vld [vmem:[%s617 + $0x158] sm:$0xff]
        %v1659 = vld [vmem:[%s617 + $0x160] sm:$0xff]
        %v1660 = vld [vmem:[%s617 + $0x168] sm:$0xff]
        %v1661 = vld [vmem:[%s617 + $0x170] sm:$0xff]
        %v1662 = vld [vmem:[%s617 + $0x178] sm:$0xff]
        %v1663 = vld [vmem:[%s627] sm:$0x3]
        %v1665 = vlaneseq
        %v1666 = vshrl.u32 %v1665, 7
        %v1667 = vsub.s32 0, %v1666
        %v1668 = vrot.slane %v1663, %v1667
        %v1669 = vlaneseq
        %v1670 = vshrl.u32 %v1669, 7
        %v1671 = vsub.s32 1, %v1670
        %v1672 = vrot.slane %v1663, %v1671
        %vm1675 = vcmask 523264
        %v1677 = vsel %vm1675, %v1584, 0
        %v1680 = vsel %vm1675, %v1586, 0
        %v1683 = vsel %vm1675, %v1588, 0
        %v1686 = vsel %vm1675, %v1590, 0
        %v1689 = vsel %vm1675, %v1592, 0
        %v1692 = vsel %vm1675, %v1594, 0
        %v1695 = vsel %vm1675, %v1596, 0
        %v1698 = vsel %vm1675, %v1598, 0
        %v1701 = vsel %vm1675, %v1600, 0
        %v1704 = vsel %vm1675, %v1602, 0
        %v1707 = vsel %vm1675, %v1604, 0
        %v1710 = vsel %vm1675, %v1606, 0
        %v1713 = vsel %vm1675, %v1608, 0
        %v1716 = vsel %vm1675, %v1610, 0
        %v1719 = vsel %vm1675, %v1612, 0
        %v1722 = vsel %vm1675, %v1614, 0
        %1724 = vmatprep.subr.mxu0 %v1646
        %1725 = vmatpush1.msra.mxu0 %v1645
        %1726 = vmatprep.subr.mxu0 %v1644
        %1727 = vmatpush1.msra.mxu0 %v1643
        %1728 = vmatprep.subr.mxu0 %v1642
        %1729 = vmatpush1.msra.mxu0 %v1641
        %1730 = vmatprep.subr.mxu0 %v1640
        %1731 = vmatpush1.msra.mxu0 %v1639
        %1732 = vmatprep.subr.mxu0 %v1638
        %1733 = vmatpush1.msra.mxu0 %v1637
        %1734 = vmatprep.subr.mxu0 %v1636
        %1735 = vmatpush1.msra.mxu0 %v1635
        %1736 = vmatprep.subr.mxu0 %v1634
        %1737 = vmatpush1.msra.mxu0 %v1633
        %1738 = vmatprep.subr.mxu0 %v1632
        %1739 = vmatpush1.msra.mxu0 %v1631
        %1740 = vmatprep.subr.mxu0 %v1630
        %1741 = vmatpush1.msra.mxu0 %v1629
        %1742 = vmatprep.subr.mxu0 %v1628
        %1743 = vmatpush1.msra.mxu0 %v1627
        %1744 = vmatprep.subr.mxu0 %v1626
        %1745 = vmatpush1.msra.mxu0 %v1625
        %1746 = vmatprep.subr.mxu0 %v1624
        %1747 = vmatpush1.msra.mxu0 %v1623
        %1748 = vmatprep.subr.mxu0 %v1622
        %1749 = vmatpush1.msra.mxu0 %v1621
        %1750 = vmatprep.subr.mxu0 %v1620
        %1751 = vmatpush1.msra.mxu0 %v1619
        %1752 = vmatprep.subr.mxu0 %v1618
        %1753 = vmatpush1.msra.mxu0 %v1617
        %1754 = vmatprep.subr.mxu0 %v1616
        %1755 = vmatpush1.msra.mxu0 %v1615
        %1756 = vmatprep.subr.mxu0 0.0
        %1757 = vmatpush2.msra.mxu0 0.0
        %1758 = vmatprep.subr.mxu0 0.0
        %1759 = vmatpush2.msra.mxu0 0.0
        %1760 = vmatprep.subr.mxu0 0.0
        %1761 = vmatpush2.msra.mxu0 0.0
        %1762 = vmatprep.subr.mxu0 0.0
        %1763 = vmatpush2.msra.mxu0 0.0
        %1764 = vmatprep.subr.mxu0 0.0
        %1765 = vmatpush2.msra.mxu0 0.0
        %1766 = vmatprep.subr.mxu0 0.0
        %1767 = vmatpush2.msra.mxu0 0.0
        %1768 = vmatprep.subr.mxu0 0.0
        %1769 = vmatpush2.msra.mxu0 0.0
        %1770 = vmatprep.subr.mxu0 0.0
        %1771 = vmatpush2.msra.mxu0 0.0
        %1772 = vmatprep.subr.mxu0 %v1662
        %1773 = vmatpush2.msra.mxu0 %v1661
        %1774 = vmatprep.subr.mxu0 %v1660
        %1775 = vmatpush2.msra.mxu0 %v1659
        %1776 = vmatprep.subr.mxu0 %v1658
        %1777 = vmatpush2.msra.mxu0 %v1657
        %1778 = vmatprep.subr.mxu0 %v1656
        %1779 = vmatpush2.msra.mxu0 %v1655
        %1780 = vmatprep.subr.mxu0 %v1654
        %1781 = vmatpush2.msra.mxu0 %v1653
        %1782 = vmatprep.subr.mxu0 %v1652
        %1783 = vmatpush2.msra.mxu0 %v1651
        %1784 = vmatprep.subr.mxu0 %v1650
        %1785 = vmatpush2.msra.mxu0 %v1649
        %1786 = vmatprep.subr.mxu0 %v1648
        %1787 = vmatpush2.msra.mxu0 %v1647
        %1788 = vmatprep.mubr.f32.mxu0 %v1677
        %1789 = vmatmul.mubr.f32.gmra.mxu0 %v1583
        %v1790 = vpop.f32.mrf.mxu0
        %v1791 = vadd.f32 %v1668, %v1790
        %v1792 = vpop.f32.mrf.mxu0
        %v1793 = vadd.f32 %v1672, %v1792
        %1794 = vmatprep.mubr.f32.mxu0 %v1680
        %1795 = vmatmul.mubr.f32.gmra.mxu0 %v1585
        %v1796 = vpop.f32.mrf.mxu0
        %v1797 = vadd.f32 %v1668, %v1796
        %v1798 = vpop.f32.mrf.mxu0
        %v1799 = vadd.f32 %v1672, %v1798
        %1800 = vmatprep.mubr.f32.mxu0 %v1683
        %1801 = vmatmul.mubr.f32.gmra.mxu0 %v1587
        %v1802 = vpop.f32.mrf.mxu0
        %v1803 = vadd.f32 %v1668, %v1802
        %v1804 = vpop.f32.mrf.mxu0
        %v1805 = vadd.f32 %v1672, %v1804
        %1806 = vmatprep.mubr.f32.mxu0 %v1686
        %1807 = vmatmul.mubr.f32.gmra.mxu0 %v1589
        %v1808 = vpop.f32.mrf.mxu0
        %v1809 = vadd.f32 %v1668, %v1808
        %v1810 = vpop.f32.mrf.mxu0
        %v1811 = vadd.f32 %v1672, %v1810
        %1812 = vmatprep.mubr.f32.mxu0 %v1689
        %1813 = vmatmul.mubr.f32.gmra.mxu0 %v1591
        %v1814 = vpop.f32.mrf.mxu0
        %v1815 = vadd.f32 %v1668, %v1814
        %v1816 = vpop.f32.mrf.mxu0
        %v1817 = vadd.f32 %v1672, %v1816
        %1818 = vmatprep.mubr.f32.mxu0 %v1692
        %1819 = vmatmul.mubr.f32.gmra.mxu0 %v1593
        %v1820 = vpop.f32.mrf.mxu0
        %v1821 = vadd.f32 %v1668, %v1820
        %v1822 = vpop.f32.mrf.mxu0
        %v1823 = vadd.f32 %v1672, %v1822
        %1824 = vmatprep.mubr.f32.mxu0 %v1695
        %1825 = vmatmul.mubr.f32.gmra.mxu0 %v1595
        %v1826 = vpop.f32.mrf.mxu0
        %v1827 = vadd.f32 %v1668, %v1826
        %v1828 = vpop.f32.mrf.mxu0
        %v1829 = vadd.f32 %v1672, %v1828
        %1830 = vmatprep.mubr.f32.mxu0 %v1698
        %1831 = vmatmul.mubr.f32.gmra.mxu0 %v1597
        %v1832 = vpop.f32.mrf.mxu0
        %v1833 = vadd.f32 %v1668, %v1832
        %v1834 = vpop.f32.mrf.mxu0
        %v1835 = vadd.f32 %v1672, %v1834
        %1836 = vmatprep.mubr.f32.mxu0 %v1701
        %1837 = vmatmul.mubr.f32.gmra.mxu0 %v1599
        %v1838 = vpop.f32.mrf.mxu0
        %v1839 = vadd.f32 %v1668, %v1838
        %v1840 = vpop.f32.mrf.mxu0
        %v1841 = vadd.f32 %v1672, %v1840
        %1842 = vmatprep.mubr.f32.mxu0 %v1704
        %1843 = vmatmul.mubr.f32.gmra.mxu0 %v1601
        %v1844 = vpop.f32.mrf.mxu0
        %v1845 = vadd.f32 %v1668, %v1844
        %v1846 = vpop.f32.mrf.mxu0
        %v1847 = vadd.f32 %v1672, %v1846
        %1848 = vmatprep.mubr.f32.mxu0 %v1707
        %1849 = vmatmul.mubr.f32.gmra.mxu0 %v1603
        %v1850 = vpop.f32.mrf.mxu0
        %v1851 = vadd.f32 %v1668, %v1850
        %v1852 = vpop.f32.mrf.mxu0
        %v1853 = vadd.f32 %v1672, %v1852
        %1854 = vmatprep.mubr.f32.mxu0 %v1710
        %1855 = vmatmul.mubr.f32.gmra.mxu0 %v1605
        %v1856 = vpop.f32.mrf.mxu0
        %v1857 = vadd.f32 %v1668, %v1856
        %v1858 = vpop.f32.mrf.mxu0
        %v1859 = vadd.f32 %v1672, %v1858
        %1860 = vmatprep.mubr.f32.mxu0 %v1713
        %1861 = vmatmul.mubr.f32.gmra.mxu0 %v1607
        %v1862 = vpop.f32.mrf.mxu0
        %v1863 = vadd.f32 %v1668, %v1862
        %v1864 = vpop.f32.mrf.mxu0
        %v1865 = vadd.f32 %v1672, %v1864
        %1866 = vmatprep.mubr.f32.mxu0 %v1716
        %1867 = vmatmul.mubr.f32.gmra.mxu0 %v1609
        %v1868 = vpop.f32.mrf.mxu0
        %v1869 = vadd.f32 %v1668, %v1868
        %v1870 = vpop.f32.mrf.mxu0
        %v1871 = vadd.f32 %v1672, %v1870
        %1872 = vmatprep.mubr.f32.mxu0 %v1719
        %1873 = vmatmul.mubr.f32.gmra.mxu0 %v1611
        %v1874 = vpop.f32.mrf.mxu0
        %v1875 = vadd.f32 %v1668, %v1874
        %v1876 = vpop.f32.mrf.mxu0
        %v1877 = vadd.f32 %v1672, %v1876
        %1878 = vmatprep.mubr.f32.mxu0 %v1722
        %1879 = vmatmul.mubr.f32.gmra.mxu0 %v1613
        %v1880 = vpop.f32.mrf.mxu0
        %v1881 = vadd.f32 %v1668, %v1880
        %v1882 = vpop.f32.mrf.mxu0
        %v1883 = vadd.f32 %v1672, %v1882
        %1884 = vdwg.mxu0
        %vm1885 = vcmp.gt.f32.partialorder %v1791, 0.0
        %vm1886 = vcmp.gt.f32.partialorder %v1793, 0.0
        %vm1887 = vcmp.gt.f32.partialorder %v1797, 0.0
        %vm1888 = vcmp.gt.f32.partialorder %v1799, 0.0
        %vm1889 = vcmp.gt.f32.partialorder %v1803, 0.0
        %vm1890 = vcmp.gt.f32.partialorder %v1805, 0.0
        %vm1891 = vcmp.gt.f32.partialorder %v1809, 0.0
        %vm1892 = vcmp.gt.f32.partialorder %v1811, 0.0
        %vm1893 = vcmp.gt.f32.partialorder %v1815, 0.0
        %vm1894 = vcmp.gt.f32.partialorder %v1817, 0.0
        %vm1895 = vcmp.gt.f32.partialorder %v1821, 0.0
        %vm1896 = vcmp.gt.f32.partialorder %v1823, 0.0
        %vm1897 = vcmp.gt.f32.partialorder %v1827, 0.0
        %vm1898 = vcmp.gt.f32.partialorder %v1829, 0.0
        %vm1899 = vcmp.gt.f32.partialorder %v1833, 0.0
        %vm1900 = vcmp.gt.f32.partialorder %v1835, 0.0
        %vm1901 = vcmp.gt.f32.partialorder %v1839, 0.0
        %vm1902 = vcmp.gt.f32.partialorder %v1841, 0.0
        %vm1903 = vcmp.gt.f32.partialorder %v1845, 0.0
        %vm1904 = vcmp.gt.f32.partialorder %v1847, 0.0
        %vm1905 = vcmp.gt.f32.partialorder %v1851, 0.0
        %vm1906 = vcmp.gt.f32.partialorder %v1853, 0.0
        %vm1907 = vcmp.gt.f32.partialorder %v1857, 0.0
        %vm1908 = vcmp.gt.f32.partialorder %v1859, 0.0
        %vm1909 = vcmp.gt.f32.partialorder %v1863, 0.0
        %vm1910 = vcmp.gt.f32.partialorder %v1865, 0.0
        %vm1911 = vcmp.gt.f32.partialorder %v1869, 0.0
        %vm1912 = vcmp.gt.f32.partialorder %v1871, 0.0
        %vm1913 = vcmp.gt.f32.partialorder %v1875, 0.0
        %vm1914 = vcmp.gt.f32.partialorder %v1877, 0.0
        %vm1915 = vcmp.gt.f32.partialorder %v1881, 0.0
        %vm1916 = vcmp.gt.f32.partialorder %v1883, 0.0
        %v1917 = vmul.f32 %v1791, 10.0
        %v1918 = vmul.f32 %v1793, 10.0
        %v1919 = vmul.f32 %v1797, 10.0
        %v1920 = vmul.f32 %v1799, 10.0
        %v1921 = vmul.f32 %v1803, 10.0
        %v1922 = vmul.f32 %v1805, 10.0
        %v1923 = vmul.f32 %v1809, 10.0
        %v1924 = vmul.f32 %v1811, 10.0
        %v1925 = vmul.f32 %v1815, 10.0
        %v1926 = vmul.f32 %v1817, 10.0
        %v1927 = vmul.f32 %v1821, 10.0
        %v1928 = vmul.f32 %v1823, 10.0
        %v1929 = vmul.f32 %v1827, 10.0
        %v1930 = vmul.f32 %v1829, 10.0
        %v1931 = vmul.f32 %v1833, 10.0
        %v1932 = vmul.f32 %v1835, 10.0
        %v1933 = vmul.f32 %v1839, 10.0
        %v1934 = vmul.f32 %v1841, 10.0
        %v1935 = vmul.f32 %v1845, 10.0
        %v1936 = vmul.f32 %v1847, 10.0
        %v1937 = vmul.f32 %v1851, 10.0
        %v1938 = vmul.f32 %v1853, 10.0
        %v1939 = vmul.f32 %v1857, 10.0
        %v1940 = vmul.f32 %v1859, 10.0
        %v1941 = vmul.f32 %v1863, 10.0
        %v1942 = vmul.f32 %v1865, 10.0
        %v1943 = vmul.f32 %v1869, 10.0
        %v1944 = vmul.f32 %v1871, 10.0
        %v1945 = vmul.f32 %v1875, 10.0
        %v1946 = vmul.f32 %v1877, 10.0
        %v1947 = vmul.f32 %v1881, 10.0
        %v1948 = vmul.f32 %v1883, 10.0
        %v1949 = vmul.f32 %v1917, 1.442695
        %v1950 = vpow.pop %v1949
        %v1951 = vmul.f32 %v1918, 1.442695
        %v1952 = vpow.pop %v1951
        %v1953 = vmul.f32 %v1919, 1.442695
        %v1954 = vpow.pop %v1953
        %v1955 = vmul.f32 %v1920, 1.442695
        %v1956 = vpow.pop %v1955
        %v1957 = vmul.f32 %v1921, 1.442695
        %v1958 = vpow.pop %v1957
        %v1959 = vmul.f32 %v1922, 1.442695
        %v1960 = vpow.pop %v1959
        %v1961 = vmul.f32 %v1923, 1.442695
        %v1962 = vpow.pop %v1961
        %v1963 = vmul.f32 %v1924, 1.442695
        %v1964 = vpow.pop %v1963
        %v1965 = vmul.f32 %v1925, 1.442695
        %v1966 = vpow.pop %v1965
        %v1967 = vmul.f32 %v1926, 1.442695
        %v1968 = vpow.pop %v1967
        %v1969 = vmul.f32 %v1927, 1.442695
        %v1970 = vpow.pop %v1969
        %v1971 = vmul.f32 %v1928, 1.442695
        %v1972 = vpow.pop %v1971
        %v1973 = vmul.f32 %v1929, 1.442695
        %v1974 = vpow.pop %v1973
        %v1975 = vmul.f32 %v1930, 1.442695
        %v1976 = vpow.pop %v1975
        %v1977 = vmul.f32 %v1931, 1.442695
        %v1978 = vpow.pop %v1977
        %v1979 = vmul.f32 %v1932, 1.442695
        %v1980 = vpow.pop %v1979
        %v1981 = vmul.f32 %v1933, 1.442695
        %v1982 = vpow.pop %v1981
        %v1983 = vmul.f32 %v1934, 1.442695
        %v1984 = vpow.pop %v1983
        %v1985 = vmul.f32 %v1935, 1.442695
        %v1986 = vpow.pop %v1985
        %v1987 = vmul.f32 %v1936, 1.442695
        %v1988 = vpow.pop %v1987
        %v1989 = vmul.f32 %v1937, 1.442695
        %v1990 = vpow.pop %v1989
        %v1991 = vmul.f32 %v1938, 1.442695
        %v1992 = vpow.pop %v1991
        %v1993 = vmul.f32 %v1939, 1.442695
        %v1994 = vpow.pop %v1993
        %v1995 = vmul.f32 %v1940, 1.442695
        %v1996 = vpow.pop %v1995
        %v1997 = vmul.f32 %v1941, 1.442695
        %v1998 = vpow.pop %v1997
        %v1999 = vmul.f32 %v1942, 1.442695
        %v2000 = vpow.pop %v1999
        %v2001 = vmul.f32 %v1943, 1.442695
        %v2002 = vpow.pop %v2001
        %v2003 = vmul.f32 %v1944, 1.442695
        %v2004 = vpow.pop %v2003
        %v2005 = vmul.f32 %v1945, 1.442695
        %v2006 = vpow.pop %v2005
        %v2007 = vmul.f32 %v1946, 1.442695
        %v2008 = vpow.pop %v2007
        %v2009 = vmul.f32 %v1947, 1.442695
        %v2010 = vpow.pop %v2009
        %v2011 = vmul.f32 %v1948, 1.442695
        %v2012 = vpow.pop %v2011
        %v2013 = vsub.f32 %v1950, 1.0
        %v2014 = vsub.f32 %v1952, 1.0
        %v2015 = vsub.f32 %v1954, 1.0
        %v2016 = vsub.f32 %v1956, 1.0
        %v2017 = vsub.f32 %v1958, 1.0
        %v2018 = vsub.f32 %v1960, 1.0
        %v2019 = vsub.f32 %v1962, 1.0
        %v2020 = vsub.f32 %v1964, 1.0
        %v2021 = vsub.f32 %v1966, 1.0
        %v2022 = vsub.f32 %v1968, 1.0
        %v2023 = vsub.f32 %v1970, 1.0
        %v2024 = vsub.f32 %v1972, 1.0
        %v2025 = vsub.f32 %v1974, 1.0
        %v2026 = vsub.f32 %v1976, 1.0
        %v2027 = vsub.f32 %v1978, 1.0
        %v2028 = vsub.f32 %v1980, 1.0
        %v2029 = vsub.f32 %v1982, 1.0
        %v2030 = vsub.f32 %v1984, 1.0
        %v2031 = vsub.f32 %v1986, 1.0
        %v2032 = vsub.f32 %v1988, 1.0
        %v2033 = vsub.f32 %v1990, 1.0
        %v2034 = vsub.f32 %v1992, 1.0
        %v2035 = vsub.f32 %v1994, 1.0
        %v2036 = vsub.f32 %v1996, 1.0
        %v2037 = vsub.f32 %v1998, 1.0
        %v2038 = vsub.f32 %v2000, 1.0
        %v2039 = vsub.f32 %v2002, 1.0
        %v2040 = vsub.f32 %v2004, 1.0
        %v2041 = vsub.f32 %v2006, 1.0
        %v2042 = vsub.f32 %v2008, 1.0
        %v2043 = vsub.f32 %v2010, 1.0
        %v2044 = vsub.f32 %v2012, 1.0
        %v2045 = vmul.f32 %v2013, 0.1
        %v2046 = vmul.f32 %v2014, 0.1
        %v2047 = vmul.f32 %v2015, 0.1
        %v2048 = vmul.f32 %v2016, 0.1
        %v2049 = vmul.f32 %v2017, 0.1
        %v2050 = vmul.f32 %v2018, 0.1
        %v2051 = vmul.f32 %v2019, 0.1
        %v2052 = vmul.f32 %v2020, 0.1
        %v2053 = vmul.f32 %v2021, 0.1
        %v2054 = vmul.f32 %v2022, 0.1
        %v2055 = vmul.f32 %v2023, 0.1
        %v2056 = vmul.f32 %v2024, 0.1
        %v2057 = vmul.f32 %v2025, 0.1
        %v2058 = vmul.f32 %v2026, 0.1
        %v2059 = vmul.f32 %v2027, 0.1
        %v2060 = vmul.f32 %v2028, 0.1
        %v2061 = vmul.f32 %v2029, 0.1
        %v2062 = vmul.f32 %v2030, 0.1
        %v2063 = vmul.f32 %v2031, 0.1
        %v2064 = vmul.f32 %v2032, 0.1
        %v2065 = vmul.f32 %v2033, 0.1
        %v2066 = vmul.f32 %v2034, 0.1
        %v2067 = vmul.f32 %v2035, 0.1
        %v2068 = vmul.f32 %v2036, 0.1
        %v2069 = vmul.f32 %v2037, 0.1
        %v2070 = vmul.f32 %v2038, 0.1
        %v2071 = vmul.f32 %v2039, 0.1
        %v2072 = vmul.f32 %v2040, 0.1
        %v2073 = vmul.f32 %v2041, 0.1
        %v2074 = vmul.f32 %v2042, 0.1
        %v2075 = vmul.f32 %v2043, 0.1
        %v2076 = vmul.f32 %v2044, 0.1
        %v2077 = vsel %vm1885, %v1791, %v2045
        %v2078 = vsel %vm1886, %v1793, %v2046
        %v2079 = vsel %vm1887, %v1797, %v2047
        %v2080 = vsel %vm1888, %v1799, %v2048
        %v2081 = vsel %vm1889, %v1803, %v2049
        %v2082 = vsel %vm1890, %v1805, %v2050
        %v2083 = vsel %vm1891, %v1809, %v2051
        %v2084 = vsel %vm1892, %v1811, %v2052
        %v2085 = vsel %vm1893, %v1815, %v2053
        %v2086 = vsel %vm1894, %v1817, %v2054
        %v2087 = vsel %vm1895, %v1821, %v2055
        %v2088 = vsel %vm1896, %v1823, %v2056
        %v2089 = vsel %vm1897, %v1827, %v2057
        %v2090 = vsel %vm1898, %v1829, %v2058
        %v2091 = vsel %vm1899, %v1833, %v2059
        %v2092 = vsel %vm1900, %v1835, %v2060
        %v2093 = vsel %vm1901, %v1839, %v2061
        %v2094 = vsel %vm1902, %v1841, %v2062
        %v2095 = vsel %vm1903, %v1845, %v2063
        %v2096 = vsel %vm1904, %v1847, %v2064
        %v2097 = vsel %vm1905, %v1851, %v2065
        %v2098 = vsel %vm1906, %v1853, %v2066
        %v2099 = vsel %vm1907, %v1857, %v2067
        %v2100 = vsel %vm1908, %v1859, %v2068
        %v2101 = vsel %vm1909, %v1863, %v2069
        %v2102 = vsel %vm1910, %v1865, %v2070
        %v2103 = vsel %vm1911, %v1869, %v2071
        %v2104 = vsel %vm1912, %v1871, %v2072
        %v2105 = vsel %vm1913, %v1875, %v2073
        %v2106 = vsel %vm1914, %v1877, %v2074
        %v2107 = vsel %vm1915, %v1881, %v2075
        %v2108 = vsel %vm1916, %v1883, %v2076
        %v2109 = vld [vmem:[%s637] sm:$0x3]
        %v2111 = vlaneseq
        %v2112 = vshrl.u32 %v2111, 7
        %v2113 = vsub.s32 0, %v2112
        %v2114 = vrot.slane %v2109, %v2113
        %v2115 = vlaneseq
        %v2116 = vshrl.u32 %v2115, 7
        %v2117 = vsub.s32 1, %v2116
        %v2118 = vrot.slane %v2109, %v2117
        %v2121 = vmul.f32 %v2077, %v2114
        %v2122 = vmul.f32 %v2078, %v2118
        %v2123 = vmul.f32 %v2079, %v2114
        %v2124 = vmul.f32 %v2080, %v2118
        %v2125 = vmul.f32 %v2081, %v2114
        %v2126 = vmul.f32 %v2082, %v2118
        %v2127 = vmul.f32 %v2083, %v2114
        %v2128 = vmul.f32 %v2084, %v2118
        %v2129 = vmul.f32 %v2085, %v2114
        %v2130 = vmul.f32 %v2086, %v2118
        %v2131 = vmul.f32 %v2087, %v2114
        %v2132 = vmul.f32 %v2088, %v2118
        %v2133 = vmul.f32 %v2089, %v2114
        %v2134 = vmul.f32 %v2090, %v2118
        %v2135 = vmul.f32 %v2091, %v2114
        %v2136 = vmul.f32 %v2092, %v2118
        %v2137 = vmul.f32 %v2093, %v2114
        %v2138 = vmul.f32 %v2094, %v2118
        %v2139 = vmul.f32 %v2095, %v2114
        %v2140 = vmul.f32 %v2096, %v2118
        %v2141 = vmul.f32 %v2097, %v2114
        %v2142 = vmul.f32 %v2098, %v2118
        %v2143 = vmul.f32 %v2099, %v2114
        %v2144 = vmul.f32 %v2100, %v2118
        %v2145 = vmul.f32 %v2101, %v2114
        %v2146 = vmul.f32 %v2102, %v2118
        %v2147 = vmul.f32 %v2103, %v2114
        %v2148 = vmul.f32 %v2104, %v2118
        %v2149 = vmul.f32 %v2105, %v2114
        %v2150 = vmul.f32 %v2106, %v2118
        %v2151 = vmul.f32 %v2107, %v2114
        %v2152 = vmul.f32 %v2108, %v2118
        %vm2153 = vcmask 261120
        %v2154 = vsel %vm2153, %v2122, 0.0
        %v2155 = vadd.f32 %v2121, %v2154
        %2156 = vadd.xlane.f32.xlu0 %v2155
        %v2157 = vpop.xlane.xlu0 %2156
        %v2158 = vsel %vm2153, %v2124, 0.0
        %v2159 = vadd.f32 %v2123, %v2158
        %2160 = vadd.xlane.f32.xlu0 %v2159
        %v2161 = vpop.xlane.xlu0 %2160
        %v2162 = vsel %vm2153, %v2126, 0.0
        %v2163 = vadd.f32 %v2125, %v2162
        %2164 = vadd.xlane.f32.xlu0 %v2163
        %v2165 = vpop.xlane.xlu0 %2164
        %v2166 = vsel %vm2153, %v2128, 0.0
        %v2167 = vadd.f32 %v2127, %v2166
        %2168 = vadd.xlane.f32.xlu0 %v2167
        %v2169 = vpop.xlane.xlu0 %2168
        %v2170 = vsel %vm2153, %v2130, 0.0
        %v2171 = vadd.f32 %v2129, %v2170
        %2172 = vadd.xlane.f32.xlu0 %v2171
        %v2173 = vpop.xlane.xlu0 %2172
        %v2174 = vsel %vm2153, %v2132, 0.0
        %v2175 = vadd.f32 %v2131, %v2174
        %2176 = vadd.xlane.f32.xlu0 %v2175
        %v2177 = vpop.xlane.xlu0 %2176
        %v2178 = vsel %vm2153, %v2134, 0.0
        %v2179 = vadd.f32 %v2133, %v2178
        %2180 = vadd.xlane.f32.xlu0 %v2179
        %v2181 = vpop.xlane.xlu0 %2180
        %v2182 = vsel %vm2153, %v2136, 0.0
        %v2183 = vadd.f32 %v2135, %v2182
        %2184 = vadd.xlane.f32.xlu0 %v2183
        %v2185 = vpop.xlane.xlu0 %2184
        %v2186 = vsel %vm2153, %v2138, 0.0
        %v2187 = vadd.f32 %v2137, %v2186
        %2188 = vadd.xlane.f32.xlu0 %v2187
        %v2189 = vpop.xlane.xlu0 %2188
        %v2190 = vsel %vm2153, %v2140, 0.0
        %v2191 = vadd.f32 %v2139, %v2190
        %2192 = vadd.xlane.f32.xlu0 %v2191
        %v2193 = vpop.xlane.xlu0 %2192
        %v2194 = vsel %vm2153, %v2142, 0.0
        %v2195 = vadd.f32 %v2141, %v2194
        %2196 = vadd.xlane.f32.xlu0 %v2195
        %v2197 = vpop.xlane.xlu0 %2196
        %v2198 = vsel %vm2153, %v2144, 0.0
        %v2199 = vadd.f32 %v2143, %v2198
        %2200 = vadd.xlane.f32.xlu0 %v2199
        %v2201 = vpop.xlane.xlu0 %2200
        %v2202 = vsel %vm2153, %v2146, 0.0
        %v2203 = vadd.f32 %v2145, %v2202
        %2204 = vadd.xlane.f32.xlu0 %v2203
        %v2205 = vpop.xlane.xlu0 %2204
        %v2206 = vsel %vm2153, %v2148, 0.0
        %v2207 = vadd.f32 %v2147, %v2206
        %2208 = vadd.xlane.f32.xlu0 %v2207
        %v2209 = vpop.xlane.xlu0 %2208
        %v2210 = vsel %vm2153, %v2150, 0.0
        %v2211 = vadd.f32 %v2149, %v2210
        %2212 = vadd.xlane.f32.xlu0 %v2211
        %v2213 = vpop.xlane.xlu0 %2212
        %v2214 = vsel %vm2153, %v2152, 0.0
        %v2215 = vadd.f32 %v2151, %v2214
        %2216 = vadd.xlane.f32.xlu0 %v2215
        %v2217 = vpop.xlane.xlu0 %2216
        %v2218 = vld [vmem:[%s646] sm:$0x1]
        %v2220 = vlaneseq
        %v2221 = vshrl.u32 %v2220, 7
        %v2222 = vsub.s32 0, %v2221
        %v2223 = vrot.slane %v2218, %v2222
        %v2225 = vadd.f32 %v2157, %v2223
        %v2226 = vadd.f32 %v2161, %v2223
        %v2227 = vadd.f32 %v2165, %v2223
        %v2228 = vadd.f32 %v2169, %v2223
        %v2229 = vadd.f32 %v2173, %v2223
        %v2230 = vadd.f32 %v2177, %v2223
        %v2231 = vadd.f32 %v2181, %v2223
        %v2232 = vadd.f32 %v2185, %v2223
        %v2233 = vadd.f32 %v2189, %v2223
        %v2234 = vadd.f32 %v2193, %v2223
        %v2235 = vadd.f32 %v2197, %v2223
        %v2236 = vadd.f32 %v2201, %v2223
        %v2237 = vadd.f32 %v2205, %v2223
        %v2238 = vadd.f32 %v2209, %v2223
        %v2239 = vadd.f32 %v2213, %v2223
        %v2240 = vadd.f32 %v2217, %v2223
        %vm2241 = vcmask 7168
        %2242 = vst.msk [vmem:[%s654] sm:$0xff] %vm2241, %v2225
        %2243 = vst.msk [vmem:[%s654 + $0x8] sm:$0xff] %vm2241, %v2226
        %2244 = vst.msk [vmem:[%s654 + $0x10] sm:$0xff] %vm2241, %v2227
        %2245 = vst.msk [vmem:[%s654 + $0x18] sm:$0xff] %vm2241, %v2228
        %2246 = vst.msk [vmem:[%s654 + $0x20] sm:$0xff] %vm2241, %v2229
        %2247 = vst.msk [vmem:[%s654 + $0x28] sm:$0xff] %vm2241, %v2230
        %2248 = vst.msk [vmem:[%s654 + $0x30] sm:$0xff] %vm2241, %v2231
        %2249 = vst.msk [vmem:[%s654 + $0x38] sm:$0xff] %vm2241, %v2232
        %2250 = vst.msk [vmem:[%s654 + $0x40] sm:$0xff] %vm2241, %v2233
        %2251 = vst.msk [vmem:[%s654 + $0x48] sm:$0xff] %vm2241, %v2234
        %2252 = vst.msk [vmem:[%s654 + $0x50] sm:$0xff] %vm2241, %v2235
        %2253 = vst.msk [vmem:[%s654 + $0x58] sm:$0xff] %vm2241, %v2236
        %2254 = vst.msk [vmem:[%s654 + $0x60] sm:$0xff] %vm2241, %v2237
        %2255 = vst.msk [vmem:[%s654 + $0x68] sm:$0xff] %vm2241, %v2238
        %2256 = vst.msk [vmem:[%s654 + $0x70] sm:$0xff] %vm2241, %v2239
        %2257 = vst.msk [vmem:[%s654 + $0x78] sm:$0xff] %vm2241, %v2240
      $region60: #{tpu_custom_call.1} parent=55 // pred_fallthru
        _
      %p2258 = scmp.ge.s32.totalorder %s656, 7
      // Predicated region
      $region61: #{tpu_custom_call.1} parent=55 // pred_check
        %p2259 = pneg %p2258
      $region62: #{tpu_custom_call.1} parent=55 // pred_check_branch
        %2261 = sbr.rel (%p2259) target = $region64
      $region63: #{tpu_custom_call.1} parent=55 // pred_region
        %vm2262 = vcmask 7168
        %2263 = vst.msk [vmem:[%s654] sm:$0xff] %vm2262, 0.0
        %2264 = vst.msk [vmem:[%s654 + $0x8] sm:$0xff] %vm2262, 0.0
        %2265 = vst.msk [vmem:[%s654 + $0x10] sm:$0xff] %vm2262, 0.0
        %2266 = vst.msk [vmem:[%s654 + $0x18] sm:$0xff] %vm2262, 0.0
        %2267 = vst.msk [vmem:[%s654 + $0x20] sm:$0xff] %vm2262, 0.0
        %2268 = vst.msk [vmem:[%s654 + $0x28] sm:$0xff] %vm2262, 0.0
        %2269 = vst.msk [vmem:[%s654 + $0x30] sm:$0xff] %vm2262, 0.0
        %2270 = vst.msk [vmem:[%s654 + $0x38] sm:$0xff] %vm2262, 0.0
        %2271 = vst.msk [vmem:[%s654 + $0x40] sm:$0xff] %vm2262, 0.0
        %2272 = vst.msk [vmem:[%s654 + $0x48] sm:$0xff] %vm2262, 0.0
        %2273 = vst.msk [vmem:[%s654 + $0x50] sm:$0xff] %vm2262, 0.0
        %2274 = vst.msk [vmem:[%s654 + $0x58] sm:$0xff] %vm2262, 0.0
        %2275 = vst.msk [vmem:[%s654 + $0x60] sm:$0xff] %vm2262, 0.0
        %2276 = vst.msk [vmem:[%s654 + $0x68] sm:$0xff] %vm2262, 0.0
        %2277 = vst.msk [vmem:[%s654 + $0x70] sm:$0xff] %vm2262, 0.0
        %2278 = vst.msk [vmem:[%s654 + $0x78] sm:$0xff] %vm2262, 0.0
      $region64: #{tpu_custom_call.1} parent=55 // pred_fallthru
        _
      %s2279 = smul.u32 16, %s27
      %p2280 = scmp.lt.s32.totalorder %s2279, 159
      %s2281 = scalar_select %p2280, %s2279, 159
      %s2282 = smul.addr %s2281, 8
      %s2283 = scalar_lea.vmem %s10, %s2282
      // Predicated region
      $region65: #{tpu_custom_call.1} parent=55 // pred_check
        %p2284 = pneg %p327
      $region66: #{tpu_custom_call.1} parent=55 // pred_check_branch
        %2286 = sbr.rel (%p2284) target = $region68
      $region67: #{tpu_custom_call.1} parent=55 // pred_region
        %s2287 = smul.u32 16, %s27
      $region68: #{tpu_custom_call.1} parent=55 // pred_fallthru
        _
    $region56: #{tpu_custom_call.1} parent=5 // pred_fallthru
      _
    %p2288 = scmp.le.s32.totalorder 2, %s22
    // Predicated region
    $region69: #{tpu_custom_call.1} parent=5 // pred_check
      %p2289 = pneg %p2288
    $region70: #{tpu_custom_call.1} parent=5 // pred_check_branch
      %2291 = sbr.rel (%p2289) target = $region72
    $region71: #{tpu_custom_call.1} parent=5 // pred_region
      %s2292 = ssub.s32 %s22, 2
      // Predicated region
      $region73: #{tpu_custom_call.1} parent=71 // pred_check
        %p2293 = pneg %p333
      $region74: #{tpu_custom_call.1} parent=71 // pred_check_branch
        %2295 = sbr.rel (%p2293) target = $region76
      $region75: #{tpu_custom_call.1} parent=71 // pred_region
        %s2296 = smul.u32 16, %s28
        %p2297 = scmp.lt.s32.totalorder %s2296, 159
        %s2298 = scalar_select %p2297, %s2296, 159
        %s2299 = smul.addr %s2298, 8
        %s2300 = scalar_lea.vmem %s10, %s2299
      $region76: #{tpu_custom_call.1} parent=71 // pred_fallthru
        _
    $region72: #{tpu_custom_call.1} parent=5 // pred_fallthru
      _
  $region6: #{tpu_custom_call.1} parent=0 // loop_footer
    %s26 = sadd.s32 1, %s22
  $region7: #{tpu_custom_call.1} parent=0 // loop_footer_branch
    %21 = sbr.rel target = $region3
  $region8: #{tpu_custom_call.1} parent=0 // loop_exit
    _

</llo_original>
